<compile_context>
chip_gen: v7x
topology: tpu7x:2x2x1
jax: 0.10.0
libtpu: 0.0.40
codegen_flags: <defaults>
</compile_context>

<pallas_src>
import functools

import jax
import jax.numpy as jnp
import numpy as np
from jax.experimental import pallas as pl
from jax.experimental.pallas import tpu as pltpu

K = 4           # ConvTranspose2d kernel size
STRIDE = 2
PAD = 1
EPS = 1e-5      # InstanceNorm2d default eps


# ----------------------------- Pallas kernel --------------------------------
def _dblock_kernel(x_ref, w_ref, p_ref, m_ref, out_ref, acc_ref, *,
                   mode, H, W, Wq, n_valid):
    """One (sample, Cout-tile) grid step.

    x_ref  : (1, Cin, Lp)  bf16  flattened zero-padded ReLU'd input, row stride Wq=W+2,
                                 Lp = (H+3)*Wq (one extra zero row so all windows fit).
    w_ref  : (16, Ct, Cin) bf16  per-(phase, tap) weight matrices.
    p_ref  : (Ct, 3)       f32   packed [bias, gamma, beta].
    m_ref  : (1, L)        f32   1.0 on real output columns, 0.0 on padded garbage cols.
    out_ref: (1, 4, Ct, L) bf16  phase-major output, L = H*Wq.
    acc_ref: (4, Ct, L)    f32   per-phase accumulator (VMEM scratch).
    """
    L = H * Wq

    # --- 16 tap matmuls, grouped by the 9 distinct shifted input windows -------------
    # out[2m+ph, 2n+pw] = sum_{dh,dw in {0,1}} xpad[m+ph+dh, n+pw+dw] * W[ph,pw,dh,dw]
    written = set()
    for r in range(3):              # r = ph + dh  (row offset of the window)
        for c in range(3):          # c = pw + dw  (col offset of the window)
            off = r * Wq + c
            xt = x_ref[0, :, off:off + L]                     # (Cin, L) bf16 window
            for ph in range(2):
                dh = r - ph
                if dh not in (0, 1):
                    continue
                for pw in range(2):
                    dw = c - pw
                    if dw not in (0, 1):
                        continue
                    q = 2 * ph + pw
                    t = ((2 * ph + pw) * 2 + dh) * 2 + dw      # wrapper packing order
                    y = jnp.dot(w_ref[t], xt,
                                preferred_element_type=jnp.float32)   # (Ct, L) f32
                    if q in written:
                        acc_ref[q] += y
                    else:
                        acc_ref[q] = y
                        written.add(q)

    # ---------------------------------- finalize --------------------------------------
    if mode == "outermost":
        # ReLU -> ConvTranspose2d (+bias) -> Tanh
        b = p_ref[:, 0:1]                                      # (Ct, 1)
        for q in range(4):
            out_ref[0, q] = jnp.tanh(acc_ref[q] + b).astype(out_ref.dtype)
    else:
        # ReLU -> ConvTranspose2d -> InstanceNorm2d(affine); conv bias cancels exactly.
        maskf = m_ref[...]                                     # (1, L)
        ssum = None
        ssq = None
        for q in range(4):
            y = acc_ref[q]
            ym = y * maskf
            s1 = jnp.sum(ym, axis=1, keepdims=True)            # lane (XLU) reductions
            s2 = jnp.sum(ym * y, axis=1, keepdims=True)
            ssum = s1 if ssum is None else ssum + s1
            ssq = s2 if ssq is None else ssq + s2
        inv_n = 1.0 / n_valid
        mean = ssum * inv_n
        # E[y^2]-E[y]^2 in f32; fine at module scale (see review correctness note).
        var = ssq * inv_n - mean * mean
        scale = jax.lax.rsqrt(var + EPS) * p_ref[:, 1:2]       # fused affine
        shift = p_ref[:, 2:3] - mean * scale
        for q in range(4):
            out_ref[0, q] = (acc_ref[q] * scale + shift).astype(out_ref.dtype)


# ------------------------------ JAX wrapper ----------------------------------
def unet_skip_connection_dblock(x, w_t, bias, gamma, beta, *, outermost=False,
                                innermost=False):
    """Forward pass of UnetSkipConnectionDBlock.

    x     : (N, Cin, H, W)      NCHW float32
    w_t   : (Cin, Cout, 4, 4)   PyTorch ConvTranspose2d weight layout
    bias  : (Cout,)   gamma/beta : (Cout,) InstanceNorm2d affine params
    returns (N, Cout, 2H, 2W) float32
    """
    mode = "outermost" if outermost else "norm"   # innermost == mid path
    N, Cin, H, W = x.shape
    Cout = w_t.shape[1]
    Wq = W + 2                       # padded row stride of the flat layout
    Lp = (H + 3) * Wq                # flat padded length (1 top + 2 bottom zero rows)
    L = H * Wq                       # flat output length per phase (garbage cols masked)

    # Cout tiling: stats are per (sample, channel) -> tiles are fully independent.
    if Cout % 256 == 0:
        ct = 256
    elif Cout % 128 == 0:
        ct = 128
    else:
        ct = Cout
    n_ct = Cout // ct

    # Pad Cin to a sublane multiple (zero channels contribute nothing).
    cin_p = max(8, ((Cin + 7) // 8) * 8)

    # relu -> zero pad (rows (1,2), cols (1,1), channels) -> flatten -> bf16:
    # a single fused XLA pass, ~input-sized traffic.  relu(0)=0 commutes with the pad.
    xp = jnp.pad(jnp.maximum(x, 0.0),
                 ((0, 0), (0, cin_p - Cin), (1, 2), (1, 1)))
    xpf = xp.reshape(N, cin_p, Lp).astype(jnp.bfloat16)

    # Per-(phase, tap) weights: W[ph,pw,dh,dw] = w_t[:, :, 3-2dh-ph, 3-2dw-pw]^T
    w_all = jnp.stack([
        w_t[:, :, 3 - 2 * dh - ph, 3 - 2 * dw - pw].T
        for ph in range(2) for pw in range(2) for dh in range(2) for dw in range(2)
    ], axis=0)                                              # (16, Cout, Cin)
    w_all = jnp.pad(w_all, ((0, 0), (0, 0), (0, cin_p - Cin))).astype(jnp.bfloat16)

    params = jnp.stack([bias, gamma, beta], axis=1).astype(jnp.float32)   # (Cout, 3)

    # Stats mask over the flat (H*Wq) layout (1 on real columns, 0 on the 2 pad columns).
    maskf = jnp.asarray(((np.arange(L) % Wq) < W).astype(np.float32)).reshape(1, L)

    # Explicit VMEM budget (double-buffered pipeline blocks + single-buffered scratch).
    est = (2 * (cin_p * Lp * 2 + 16 * ct * cin_p * 2 + ct * 128 * 4 + L * 4
                + 4 * ct * L * 2)
           + 4 * ct * L * 4)
    vmem_limit = int(min(96 * 2 ** 20, max(32 * 2 ** 20, 2 * est)))

    cost = pl.CostEstimate(
        flops=2 * N * 16 * Cout * cin_p * L,
        transcendentals=(N * 4 * Cout * L) if mode == "outermost" else 0,
        bytes_accessed=(N * cin_p * Lp * 2 + 16 * Cout * cin_p * 2 + Cout * 3 * 4
                        + L * 4 + N * 4 * Cout * L * 2),
    )

    out = pl.pallas_call(
        functools.partial(_dblock_kernel, mode=mode, H=H, W=W, Wq=Wq,
                          n_valid=4 * H * W),
        out_shape=jax.ShapeDtypeStruct((N, 4, Cout, L), jnp.bfloat16),
        grid_spec=pltpu.PrefetchScalarGridSpec(
            num_scalar_prefetch=0,
            grid=(N, n_ct),                                    # (sample, Cout tile)
            in_specs=[
                pl.BlockSpec((1, cin_p, Lp), lambda n, j: (n, 0, 0)),   # flat padded x
                pl.BlockSpec((16, ct, cin_p), lambda n, j: (0, j, 0)),  # tap weights
                pl.BlockSpec((ct, 3), lambda n, j: (j, 0)),             # bias|gamma|beta
                pl.BlockSpec((1, L), lambda n, j: (0, 0)),              # stats mask
            ],
            out_specs=pl.BlockSpec((1, 4, ct, L), lambda n, j: (n, 0, j, 0)),
            scratch_shapes=[pltpu.VMEM((4, ct, L), jnp.float32)],       # f32 accumulators
        ),
        compiler_params=pltpu.CompilerParams(
            dimension_semantics=("parallel", "parallel"),
            vmem_limit_bytes=vmem_limit),
        cost_estimate=cost,
    )(xpf, w_all, params, maskf)

    # Pixel shuffle on bf16: drop the Wq-W garbage columns, interleave phases; the final
    # f32 cast is fused into this copy by XLA.
    out = out.reshape(N, 2, 2, Cout, H, Wq)[..., :W]        # (N, ph, pw, C, H, W)
    out = jnp.transpose(out, (0, 3, 4, 1, 5, 2))            # (N, C, H, ph, W, pw)
    return out.reshape(N, Cout, STRIDE * H, STRIDE * W).astype(jnp.float32)


# --------------------------- pure-JAX references -------------------------------
def _ref_forward(x, w_t, bias, gamma, beta, *, outermost=False, bf16_matched=False):
    """ConvTranspose2d as a dilated conv; matches PyTorch semantics.

    bf16_matched=True mirrors the kernel's precision (bf16 operands, f32 accumulation
    and norm, bf16 final rounding) so the comparison isolates implementation bugs.
    """
    xr = jnp.maximum(x, 0.0)
    w_conv = jnp.transpose(jnp.flip(w_t, axis=(2, 3)), (1, 0, 2, 3))  # (Cout,Cin,4,4)
    if bf16_matched:
        xr = xr.astype(jnp.bfloat16)
        w_conv = w_conv.astype(jnp.bfloat16)
    y = jax.lax.conv_general_dilated(
        xr, w_conv, window_strides=(1, 1), padding=[(2, 2), (2, 2)],
        lhs_dilation=(2, 2), dimension_numbers=("NCHW", "OIHW", "NCHW"),
        preferred_element_type=jnp.float32)
    y = y + bias[None, :, None, None]
    if outermost:
        out = jnp.tanh(y)
    else:
        mean = y.mean(axis=(2, 3), keepdims=True)
        var = ((y - mean) ** 2).mean(axis=(2, 3), keepdims=True)
        out = ((y - mean) / jnp.sqrt(var + EPS)) * gamma[None, :, None, None] \
            + beta[None, :, None, None]
    if bf16_matched:
        out = out.astype(jnp.bfloat16).astype(jnp.float32)
    return out


# ----------------------------------- main -------------------------------------
if __name__ == "__main__":
    N, inner_nc, outer_nc, H, W = 2, 4, 8, 16, 16

    key = jax.random.PRNGKey(0)
    kx, kw, kb = jax.random.split(key, 3)
    x = jax.random.normal(kx, (N, inner_nc, H, W), jnp.float32)
    # ConvTranspose2d weight layout: (in_channels, out_channels, kH, kW)
    w_t = 0.1 * jax.random.normal(kw, (inner_nc, outer_nc, K, K), jnp.float32)
    bias = 0.1 * jax.random.normal(kb, (outer_nc,), jnp.float32)
    gamma = jnp.ones((outer_nc,), jnp.float32)     # InstanceNorm2d(affine) defaults
    beta = jnp.zeros((outer_nc,), jnp.float32)

    # default / innermost block: ReLU -> ConvTranspose2d -> InstanceNorm2d(affine)
    y_mid = jax.block_until_ready(
        unet_skip_connection_dblock(x, w_t, bias, gamma, beta))
    ref_mid_m = _ref_forward(x, w_t, bias, gamma, beta, bf16_matched=True)
    ref_mid_f = _ref_forward(x, w_t, bias, gamma, beta)
    np.testing.assert_allclose(np.asarray(y_mid), np.asarray(ref_mid_m),
                               rtol=2e-2, atol=2e-2)   # precision-matched check
    np.testing.assert_allclose(np.asarray(y_mid), np.asarray(ref_mid_f),
                               rtol=8e-2, atol=8e-2)   # full-f32 module check

    # outermost block: ReLU -> ConvTranspose2d -> Tanh
    y_out = jax.block_until_ready(
        unet_skip_connection_dblock(x, w_t, bias, gamma, beta, outermost=True))
    ref_out_m = _ref_forward(x, w_t, bias, gamma, beta, outermost=True,
                             bf16_matched=True)
    ref_out_f = _ref_forward(x, w_t, bias, gamma, beta, outermost=True)
    np.testing.assert_allclose(np.asarray(y_out), np.asarray(ref_out_m),
                               rtol=2e-2, atol=2e-2)
    np.testing.assert_allclose(np.asarray(y_out), np.asarray(ref_out_f),
                               rtol=8e-2, atol=8e-2)

    assert y_mid.shape == (N, outer_nc, 2 * H, 2 * W)
    assert y_out.shape == (N, outer_nc, 2 * H, 2 * W)
    print("KERNEL_OK")
</pallas_src>

<mosaic_0001>
module attributes {stable_mosaic.version = 11 : i64} {
  func.func @_dblock_kernel(%arg0: i32, %arg1: i32, %arg2: memref<1x8x342xbf16, #tpu.memory_space<vmem>>, %arg3: memref<16x8x8xbf16, #tpu.memory_space<vmem>>, %arg4: memref<8x3xf32, #tpu.memory_space<vmem>>, %arg5: memref<1x288xf32, #tpu.memory_space<vmem>>, %arg6: memref<1x4x8x288xbf16, #tpu.memory_space<vmem>>, %arg7: memref<4x8x288xf32, #tpu.memory_space<vmem>>) attributes {dimension_semantics = [#tpu.dimension_semantics<parallel>, #tpu.dimension_semantics<parallel>], iteration_bounds = array<i64: 2, 1>, scalar_prefetch = 0 : i64, scratch_operands = 1 : i64, tpu.core_type = #tpu.core_type<tc>, window_params = [{transform_indices = @transform_0, window_bounds = array<i64: 1, 8, 342>}, {transform_indices = @transform_1, window_bounds = array<i64: 16, 8, 8>}, {transform_indices = @transform_2, window_bounds = array<i64: 8, 3>}, {pipeline_mode = #tpu.pipeline_mode<synchronous>, transform_indices = @transform_3, window_bounds = array<i64: 1, 288>}, {transform_indices = @transform_4, window_bounds = array<i64: 1, 4, 8, 288>}]} {
    %c0 = arith.constant 0 : index
    %c0_0 = arith.constant 0 : index
    %c0_1 = arith.constant 0 : index
    %0 = vector.load %arg2[%c0, %c0_0, %c0_1] : memref<1x8x342xbf16, #tpu.memory_space<vmem>>, vector<1x8x288xbf16>
    %1 = vector.shape_cast %0 : vector<1x8x288xbf16> to vector<8x288xbf16>
    %c0_2 = arith.constant 0 : index
    %c0_3 = arith.constant 0 : index
    %c0_4 = arith.constant 0 : index
    %2 = vector.load %arg3[%c0_2, %c0_3, %c0_4] : memref<16x8x8xbf16, #tpu.memory_space<vmem>>, vector<1x8x8xbf16>
    %3 = vector.shape_cast %2 : vector<1x8x8xbf16> to vector<8x8xbf16>
    %cst = arith.constant dense<0.000000e+00> : vector<8x288xf32>
    %4 = tpu.matmul %3, %1, %cst {dimension_numbers = #tpu.dot_dimension_numbers<[1], [0], [0], [1], [0, 0, 1, 1], [], []>} : vector<8x8xbf16>, vector<8x288xbf16>, vector<8x288xf32> -> vector<8x288xf32>
    %c0_5 = arith.constant 0 : index
    %c0_6 = arith.constant 0 : index
    %c0_7 = arith.constant 0 : index
    %5 = vector.load %arg7[%c0_5, %c0_6, %c0_7] : memref<4x8x288xf32, #tpu.memory_space<vmem>>, vector<1x8x288xf32>
    %6 = vector.shape_cast %5 : vector<1x8x288xf32> to vector<8x288xf32>
    %7 = vector.shape_cast %4 : vector<8x288xf32> to vector<1x8x288xf32>
    tpu.vector_store %arg7[%c0_5, %c0_6, %c0_7], %7 {strides = array<i32>} : memref<4x8x288xf32, #tpu.memory_space<vmem>>, vector<1x8x288xf32>,
    %c0_8 = arith.constant 0 : index
    %c0_9 = arith.constant 0 : index
    %c1 = arith.constant 1 : index
    %8 = vector.load %arg2[%c0_8, %c0_9, %c1] : memref<1x8x342xbf16, #tpu.memory_space<vmem>>, vector<1x8x288xbf16>
    %9 = vector.shape_cast %8 : vector<1x8x288xbf16> to vector<8x288xbf16>
    %c1_10 = arith.constant 1 : index
    %c0_11 = arith.constant 0 : index
    %c0_12 = arith.constant 0 : index
    %10 = vector.load %arg3[%c1_10, %c0_11, %c0_12] : memref<16x8x8xbf16, #tpu.memory_space<vmem>>, vector<1x8x8xbf16>
    %11 = vector.shape_cast %10 : vector<1x8x8xbf16> to vector<8x8xbf16>
    %cst_13 = arith.constant dense<0.000000e+00> : vector<8x288xf32>
    %12 = tpu.matmul %11, %9, %cst_13 {dimension_numbers = #tpu.dot_dimension_numbers<[1], [0], [0], [1], [0, 0, 1, 1], [], []>} : vector<8x8xbf16>, vector<8x288xbf16>, vector<8x288xf32> -> vector<8x288xf32>
    %c0_14 = arith.constant 0 : index
    %c0_15 = arith.constant 0 : index
    %c0_16 = arith.constant 0 : index
    %13 = vector.load %arg7[%c0_14, %c0_15, %c0_16] : memref<4x8x288xf32, #tpu.memory_space<vmem>>, vector<1x8x288xf32>
    %14 = vector.shape_cast %13 : vector<1x8x288xf32> to vector<8x288xf32>
    %15 = arith.addf %14, %12 : vector<8x288xf32>
    %c0_17 = arith.constant 0 : index
    %c0_18 = arith.constant 0 : index
    %c0_19 = arith.constant 0 : index
    %16 = vector.load %arg7[%c0_17, %c0_18, %c0_19] : memref<4x8x288xf32, #tpu.memory_space<vmem>>, vector<1x8x288xf32>
    %17 = vector.shape_cast %16 : vector<1x8x288xf32> to vector<8x288xf32>
    %18 = vector.shape_cast %15 : vector<8x288xf32> to vector<1x8x288xf32>
    tpu.vector_store %arg7[%c0_17, %c0_18, %c0_19], %18 {strides = array<i32>} : memref<4x8x288xf32, #tpu.memory_space<vmem>>, vector<1x8x288xf32>,
    %c4 = arith.constant 4 : index
    %c0_20 = arith.constant 0 : index
    %c0_21 = arith.constant 0 : index
    %19 = vector.load %arg3[%c4, %c0_20, %c0_21] : memref<16x8x8xbf16, #tpu.memory_space<vmem>>, vector<1x8x8xbf16>
    %20 = vector.shape_cast %19 : vector<1x8x8xbf16> to vector<8x8xbf16>
    %cst_22 = arith.constant dense<0.000000e+00> : vector<8x288xf32>
    %21 = tpu.matmul %20, %9, %cst_22 {dimension_numbers = #tpu.dot_dimension_numbers<[1], [0], [0], [1], [0, 0, 1, 1], [], []>} : vector<8x8xbf16>, vector<8x288xbf16>, vector<8x288xf32> -> vector<8x288xf32>
    %c1_23 = arith.constant 1 : index
    %c0_24 = arith.constant 0 : index
    %c0_25 = arith.constant 0 : index
    %22 = vector.load %arg7[%c1_23, %c0_24, %c0_25] : memref<4x8x288xf32, #tpu.memory_space<vmem>>, vector<1x8x288xf32>
    %23 = vector.shape_cast %22 : vector<1x8x288xf32> to vector<8x288xf32>
    %24 = vector.shape_cast %21 : vector<8x288xf32> to vector<1x8x288xf32>
    tpu.vector_store %arg7[%c1_23, %c0_24, %c0_25], %24 {strides = array<i32>} : memref<4x8x288xf32, #tpu.memory_space<vmem>>, vector<1x8x288xf32>,
    %c0_26 = arith.constant 0 : index
    %c0_27 = arith.constant 0 : index
    %c2 = arith.constant 2 : index
    %25 = vector.load %arg2[%c0_26, %c0_27, %c2] : memref<1x8x342xbf16, #tpu.memory_space<vmem>>, vector<1x8x288xbf16>
    %26 = vector.shape_cast %25 : vector<1x8x288xbf16> to vector<8x288xbf16>
    %c5 = arith.constant 5 : index
    %c0_28 = arith.constant 0 : index
    %c0_29 = arith.constant 0 : index
    %27 = vector.load %arg3[%c5, %c0_28, %c0_29] : memref<16x8x8xbf16, #tpu.memory_space<vmem>>, vector<1x8x8xbf16>
    %28 = vector.shape_cast %27 : vector<1x8x8xbf16> to vector<8x8xbf16>
    %cst_30 = arith.constant dense<0.000000e+00> : vector<8x288xf32>
    %29 = tpu.matmul %28, %26, %cst_30 {dimension_numbers = #tpu.dot_dimension_numbers<[1], [0], [0], [1], [0, 0, 1, 1], [], []>} : vector<8x8xbf16>, vector<8x288xbf16>, vector<8x288xf32> -> vector<8x288xf32>
    %c1_31 = arith.constant 1 : index
    %c0_32 = arith.constant 0 : index
    %c0_33 = arith.constant 0 : index
    %30 = vector.load %arg7[%c1_31, %c0_32, %c0_33] : memref<4x8x288xf32, #tpu.memory_space<vmem>>, vector<1x8x288xf32>
    %31 = vector.shape_cast %30 : vector<1x8x288xf32> to vector<8x288xf32>
    %32 = arith.addf %31, %29 : vector<8x288xf32>
    %c1_34 = arith.constant 1 : index
    %c0_35 = arith.constant 0 : index
    %c0_36 = arith.constant 0 : index
    %33 = vector.load %arg7[%c1_34, %c0_35, %c0_36] : memref<4x8x288xf32, #tpu.memory_space<vmem>>, vector<1x8x288xf32>
    %34 = vector.shape_cast %33 : vector<1x8x288xf32> to vector<8x288xf32>
    %35 = vector.shape_cast %32 : vector<8x288xf32> to vector<1x8x288xf32>
    tpu.vector_store %arg7[%c1_34, %c0_35, %c0_36], %35 {strides = array<i32>} : memref<4x8x288xf32, #tpu.memory_space<vmem>>, vector<1x8x288xf32>,
    %c0_37 = arith.constant 0 : index
    %c0_38 = arith.constant 0 : index
    %c18 = arith.constant 18 : index
    %36 = vector.load %arg2[%c0_37, %c0_38, %c18] : memref<1x8x342xbf16, #tpu.memory_space<vmem>>, vector<1x8x288xbf16>
    %37 = vector.shape_cast %36 : vector<1x8x288xbf16> to vector<8x288xbf16>
    %c2_39 = arith.constant 2 : index
    %c0_40 = arith.constant 0 : index
    %c0_41 = arith.constant 0 : index
    %38 = vector.load %arg3[%c2_39, %c0_40, %c0_41] : memref<16x8x8xbf16, #tpu.memory_space<vmem>>, vector<1x8x8xbf16>
    %39 = vector.shape_cast %38 : vector<1x8x8xbf16> to vector<8x8xbf16>
    %cst_42 = arith.constant dense<0.000000e+00> : vector<8x288xf32>
    %40 = tpu.matmul %39, %37, %cst_42 {dimension_numbers = #tpu.dot_dimension_numbers<[1], [0], [0], [1], [0, 0, 1, 1], [], []>} : vector<8x8xbf16>, vector<8x288xbf16>, vector<8x288xf32> -> vector<8x288xf32>
    %c0_43 = arith.constant 0 : index
    %c0_44 = arith.constant 0 : index
    %c0_45 = arith.constant 0 : index
    %41 = vector.load %arg7[%c0_43, %c0_44, %c0_45] : memref<4x8x288xf32, #tpu.memory_space<vmem>>, vector<1x8x288xf32>
    %42 = vector.shape_cast %41 : vector<1x8x288xf32> to vector<8x288xf32>
    %43 = arith.addf %42, %40 : vector<8x288xf32>
    %c0_46 = arith.constant 0 : index
    %c0_47 = arith.constant 0 : index
    %c0_48 = arith.constant 0 : index
    %44 = vector.load %arg7[%c0_46, %c0_47, %c0_48] : memref<4x8x288xf32, #tpu.memory_space<vmem>>, vector<1x8x288xf32>
    %45 = vector.shape_cast %44 : vector<1x8x288xf32> to vector<8x288xf32>
    %46 = vector.shape_cast %43 : vector<8x288xf32> to vector<1x8x288xf32>
    tpu.vector_store %arg7[%c0_46, %c0_47, %c0_48], %46 {strides = array<i32>} : memref<4x8x288xf32, #tpu.memory_space<vmem>>, vector<1x8x288xf32>,
    %c8 = arith.constant 8 : index
    %c0_49 = arith.constant 0 : index
    %c0_50 = arith.constant 0 : index
    %47 = vector.load %arg3[%c8, %c0_49, %c0_50] : memref<16x8x8xbf16, #tpu.memory_space<vmem>>, vector<1x8x8xbf16>
    %48 = vector.shape_cast %47 : vector<1x8x8xbf16> to vector<8x8xbf16>
    %cst_51 = arith.constant dense<0.000000e+00> : vector<8x288xf32>
    %49 = tpu.matmul %48, %37, %cst_51 {dimension_numbers = #tpu.dot_dimension_numbers<[1], [0], [0], [1], [0, 0, 1, 1], [], []>} : vector<8x8xbf16>, vector<8x288xbf16>, vector<8x288xf32> -> vector<8x288xf32>
    %c2_52 = arith.constant 2 : index
    %c0_53 = arith.constant 0 : index
    %c0_54 = arith.constant 0 : index
    %50 = vector.load %arg7[%c2_52, %c0_53, %c0_54] : memref<4x8x288xf32, #tpu.memory_space<vmem>>, vector<1x8x288xf32>
    %51 = vector.shape_cast %50 : vector<1x8x288xf32> to vector<8x288xf32>
    %52 = vector.shape_cast %49 : vector<8x288xf32> to vector<1x8x288xf32>
    tpu.vector_store %arg7[%c2_52, %c0_53, %c0_54], %52 {strides = array<i32>} : memref<4x8x288xf32, #tpu.memory_space<vmem>>, vector<1x8x288xf32>,
    %c0_55 = arith.constant 0 : index
    %c0_56 = arith.constant 0 : index
    %c19 = arith.constant 19 : index
    %53 = vector.load %arg2[%c0_55, %c0_56, %c19] : memref<1x8x342xbf16, #tpu.memory_space<vmem>>, vector<1x8x288xbf16>
    %54 = vector.shape_cast %53 : vector<1x8x288xbf16> to vector<8x288xbf16>
    %c3 = arith.constant 3 : index
    %c0_57 = arith.constant 0 : index
    %c0_58 = arith.constant 0 : index
    %55 = vector.load %arg3[%c3, %c0_57, %c0_58] : memref<16x8x8xbf16, #tpu.memory_space<vmem>>, vector<1x8x8xbf16>
    %56 = vector.shape_cast %55 : vector<1x8x8xbf16> to vector<8x8xbf16>
    %cst_59 = arith.constant dense<0.000000e+00> : vector<8x288xf32>
    %57 = tpu.matmul %56, %54, %cst_59 {dimension_numbers = #tpu.dot_dimension_numbers<[1], [0], [0], [1], [0, 0, 1, 1], [], []>} : vector<8x8xbf16>, vector<8x288xbf16>, vector<8x288xf32> -> vector<8x288xf32>
    %c0_60 = arith.constant 0 : index
    %c0_61 = arith.constant 0 : index
    %c0_62 = arith.constant 0 : index
    %58 = vector.load %arg7[%c0_60, %c0_61, %c0_62] : memref<4x8x288xf32, #tpu.memory_space<vmem>>, vector<1x8x288xf32>
    %59 = vector.shape_cast %58 : vector<1x8x288xf32> to vector<8x288xf32>
    %60 = arith.addf %59, %57 : vector<8x288xf32>
    %c0_63 = arith.constant 0 : index
    %c0_64 = arith.constant 0 : index
    %c0_65 = arith.constant 0 : index
    %61 = vector.load %arg7[%c0_63, %c0_64, %c0_65] : memref<4x8x288xf32, #tpu.memory_space<vmem>>, vector<1x8x288xf32>
    %62 = vector.shape_cast %61 : vector<1x8x288xf32> to vector<8x288xf32>
    %63 = vector.shape_cast %60 : vector<8x288xf32> to vector<1x8x288xf32>
    tpu.vector_store %arg7[%c0_63, %c0_64, %c0_65], %63 {strides = array<i32>} : memref<4x8x288xf32, #tpu.memory_space<vmem>>, vector<1x8x288xf32>,
    %c6 = arith.constant 6 : index
    %c0_66 = arith.constant 0 : index
    %c0_67 = arith.constant 0 : index
    %64 = vector.load %arg3[%c6, %c0_66, %c0_67] : memref<16x8x8xbf16, #tpu.memory_space<vmem>>, vector<1x8x8xbf16>
    %65 = vector.shape_cast %64 : vector<1x8x8xbf16> to vector<8x8xbf16>
    %cst_68 = arith.constant dense<0.000000e+00> : vector<8x288xf32>
    %66 = tpu.matmul %65, %54, %cst_68 {dimension_numbers = #tpu.dot_dimension_numbers<[1], [0], [0], [1], [0, 0, 1, 1], [], []>} : vector<8x8xbf16>, vector<8x288xbf16>, vector<8x288xf32> -> vector<8x288xf32>
    %c1_69 = arith.constant 1 : index
    %c0_70 = arith.constant 0 : index
    %c0_71 = arith.constant 0 : index
    %67 = vector.load %arg7[%c1_69, %c0_70, %c0_71] : memref<4x8x288xf32, #tpu.memory_space<vmem>>, vector<1x8x288xf32>
    %68 = vector.shape_cast %67 : vector<1x8x288xf32> to vector<8x288xf32>
    %69 = arith.addf %68, %66 : vector<8x288xf32>
    %c1_72 = arith.constant 1 : index
    %c0_73 = arith.constant 0 : index
    %c0_74 = arith.constant 0 : index
    %70 = vector.load %arg7[%c1_72, %c0_73, %c0_74] : memref<4x8x288xf32, #tpu.memory_space<vmem>>, vector<1x8x288xf32>
    %71 = vector.shape_cast %70 : vector<1x8x288xf32> to vector<8x288xf32>
    %72 = vector.shape_cast %69 : vector<8x288xf32> to vector<1x8x288xf32>
    tpu.vector_store %arg7[%c1_72, %c0_73, %c0_74], %72 {strides = array<i32>} : memref<4x8x288xf32, #tpu.memory_space<vmem>>, vector<1x8x288xf32>,
    %c9 = arith.constant 9 : index
    %c0_75 = arith.constant 0 : index
    %c0_76 = arith.constant 0 : index
    %73 = vector.load %arg3[%c9, %c0_75, %c0_76] : memref<16x8x8xbf16, #tpu.memory_space<vmem>>, vector<1x8x8xbf16>
    %74 = vector.shape_cast %73 : vector<1x8x8xbf16> to vector<8x8xbf16>
    %cst_77 = arith.constant dense<0.000000e+00> : vector<8x288xf32>
    %75 = tpu.matmul %74, %54, %cst_77 {dimension_numbers = #tpu.dot_dimension_numbers<[1], [0], [0], [1], [0, 0, 1, 1], [], []>} : vector<8x8xbf16>, vector<8x288xbf16>, vector<8x288xf32> -> vector<8x288xf32>
    %c2_78 = arith.constant 2 : index
    %c0_79 = arith.constant 0 : index
    %c0_80 = arith.constant 0 : index
    %76 = vector.load %arg7[%c2_78, %c0_79, %c0_80] : memref<4x8x288xf32, #tpu.memory_space<vmem>>, vector<1x8x288xf32>
    %77 = vector.shape_cast %76 : vector<1x8x288xf32> to vector<8x288xf32>
    %78 = arith.addf %77, %75 : vector<8x288xf32>
    %c2_81 = arith.constant 2 : index
    %c0_82 = arith.constant 0 : index
    %c0_83 = arith.constant 0 : index
    %79 = vector.load %arg7[%c2_81, %c0_82, %c0_83] : memref<4x8x288xf32, #tpu.memory_space<vmem>>, vector<1x8x288xf32>
    %80 = vector.shape_cast %79 : vector<1x8x288xf32> to vector<8x288xf32>
    %81 = vector.shape_cast %78 : vector<8x288xf32> to vector<1x8x288xf32>
    tpu.vector_store %arg7[%c2_81, %c0_82, %c0_83], %81 {strides = array<i32>} : memref<4x8x288xf32, #tpu.memory_space<vmem>>, vector<1x8x288xf32>,
    %c12 = arith.constant 12 : index
    %c0_84 = arith.constant 0 : index
    %c0_85 = arith.constant 0 : index
    %82 = vector.load %arg3[%c12, %c0_84, %c0_85] : memref<16x8x8xbf16, #tpu.memory_space<vmem>>, vector<1x8x8xbf16>
    %83 = vector.shape_cast %82 : vector<1x8x8xbf16> to vector<8x8xbf16>
    %cst_86 = arith.constant dense<0.000000e+00> : vector<8x288xf32>
    %84 = tpu.matmul %83, %54, %cst_86 {dimension_numbers = #tpu.dot_dimension_numbers<[1], [0], [0], [1], [0, 0, 1, 1], [], []>} : vector<8x8xbf16>, vector<8x288xbf16>, vector<8x288xf32> -> vector<8x288xf32>
    %c3_87 = arith.constant 3 : index
    %c0_88 = arith.constant 0 : index
    %c0_89 = arith.constant 0 : index
    %85 = vector.load %arg7[%c3_87, %c0_88, %c0_89] : memref<4x8x288xf32, #tpu.memory_space<vmem>>, vector<1x8x288xf32>
    %86 = vector.shape_cast %85 : vector<1x8x288xf32> to vector<8x288xf32>
    %87 = vector.shape_cast %84 : vector<8x288xf32> to vector<1x8x288xf32>
    tpu.vector_store %arg7[%c3_87, %c0_88, %c0_89], %87 {strides = array<i32>} : memref<4x8x288xf32, #tpu.memory_space<vmem>>, vector<1x8x288xf32>,
    %c0_90 = arith.constant 0 : index
    %c0_91 = arith.constant 0 : index
    %c20 = arith.constant 20 : index
    %88 = vector.load %arg2[%c0_90, %c0_91, %c20] : memref<1x8x342xbf16, #tpu.memory_space<vmem>>, vector<1x8x288xbf16>
    %89 = vector.shape_cast %88 : vector<1x8x288xbf16> to vector<8x288xbf16>
    %c7 = arith.constant 7 : index
    %c0_92 = arith.constant 0 : index
    %c0_93 = arith.constant 0 : index
    %90 = vector.load %arg3[%c7, %c0_92, %c0_93] : memref<16x8x8xbf16, #tpu.memory_space<vmem>>, vector<1x8x8xbf16>
    %91 = vector.shape_cast %90 : vector<1x8x8xbf16> to vector<8x8xbf16>
    %cst_94 = arith.constant dense<0.000000e+00> : vector<8x288xf32>
    %92 = tpu.matmul %91, %89, %cst_94 {dimension_numbers = #tpu.dot_dimension_numbers<[1], [0], [0], [1], [0, 0, 1, 1], [], []>} : vector<8x8xbf16>, vector<8x288xbf16>, vector<8x288xf32> -> vector<8x288xf32>
    %c1_95 = arith.constant 1 : index
    %c0_96 = arith.constant 0 : index
    %c0_97 = arith.constant 0 : index
    %93 = vector.load %arg7[%c1_95, %c0_96, %c0_97] : memref<4x8x288xf32, #tpu.memory_space<vmem>>, vector<1x8x288xf32>
    %94 = vector.shape_cast %93 : vector<1x8x288xf32> to vector<8x288xf32>
    %95 = arith.addf %94, %92 : vector<8x288xf32>
    %c1_98 = arith.constant 1 : index
    %c0_99 = arith.constant 0 : index
    %c0_100 = arith.constant 0 : index
    %96 = vector.load %arg7[%c1_98, %c0_99, %c0_100] : memref<4x8x288xf32, #tpu.memory_space<vmem>>, vector<1x8x288xf32>
    %97 = vector.shape_cast %96 : vector<1x8x288xf32> to vector<8x288xf32>
    %98 = vector.shape_cast %95 : vector<8x288xf32> to vector<1x8x288xf32>
    tpu.vector_store %arg7[%c1_98, %c0_99, %c0_100], %98 {strides = array<i32>} : memref<4x8x288xf32, #tpu.memory_space<vmem>>, vector<1x8x288xf32>,
    %c13 = arith.constant 13 : index
    %c0_101 = arith.constant 0 : index
    %c0_102 = arith.constant 0 : index
    %99 = vector.load %arg3[%c13, %c0_101, %c0_102] : memref<16x8x8xbf16, #tpu.memory_space<vmem>>, vector<1x8x8xbf16>
    %100 = vector.shape_cast %99 : vector<1x8x8xbf16> to vector<8x8xbf16>
    %cst_103 = arith.constant dense<0.000000e+00> : vector<8x288xf32>
    %101 = tpu.matmul %100, %89, %cst_103 {dimension_numbers = #tpu.dot_dimension_numbers<[1], [0], [0], [1], [0, 0, 1, 1], [], []>} : vector<8x8xbf16>, vector<8x288xbf16>, vector<8x288xf32> -> vector<8x288xf32>
    %c3_104 = arith.constant 3 : index
    %c0_105 = arith.constant 0 : index
    %c0_106 = arith.constant 0 : index
    %102 = vector.load %arg7[%c3_104, %c0_105, %c0_106] : memref<4x8x288xf32, #tpu.memory_space<vmem>>, vector<1x8x288xf32>
    %103 = vector.shape_cast %102 : vector<1x8x288xf32> to vector<8x288xf32>
    %104 = arith.addf %103, %101 : vector<8x288xf32>
    %c3_107 = arith.constant 3 : index
    %c0_108 = arith.constant 0 : index
    %c0_109 = arith.constant 0 : index
    %105 = vector.load %arg7[%c3_107, %c0_108, %c0_109] : memref<4x8x288xf32, #tpu.memory_space<vmem>>, vector<1x8x288xf32>
    %106 = vector.shape_cast %105 : vector<1x8x288xf32> to vector<8x288xf32>
    %107 = vector.shape_cast %104 : vector<8x288xf32> to vector<1x8x288xf32>
    tpu.vector_store %arg7[%c3_107, %c0_108, %c0_109], %107 {strides = array<i32>} : memref<4x8x288xf32, #tpu.memory_space<vmem>>, vector<1x8x288xf32>,
    %c0_110 = arith.constant 0 : index
    %c0_111 = arith.constant 0 : index
    %c36 = arith.constant 36 : index
    %108 = vector.load %arg2[%c0_110, %c0_111, %c36] : memref<1x8x342xbf16, #tpu.memory_space<vmem>>, vector<1x8x288xbf16>
    %109 = vector.shape_cast %108 : vector<1x8x288xbf16> to vector<8x288xbf16>
    %c10 = arith.constant 10 : index
    %c0_112 = arith.constant 0 : index
    %c0_113 = arith.constant 0 : index
    %110 = vector.load %arg3[%c10, %c0_112, %c0_113] : memref<16x8x8xbf16, #tpu.memory_space<vmem>>, vector<1x8x8xbf16>
    %111 = vector.shape_cast %110 : vector<1x8x8xbf16> to vector<8x8xbf16>
    %cst_114 = arith.constant dense<0.000000e+00> : vector<8x288xf32>
    %112 = tpu.matmul %111, %109, %cst_114 {dimension_numbers = #tpu.dot_dimension_numbers<[1], [0], [0], [1], [0, 0, 1, 1], [], []>} : vector<8x8xbf16>, vector<8x288xbf16>, vector<8x288xf32> -> vector<8x288xf32>
    %c2_115 = arith.constant 2 : index
    %c0_116 = arith.constant 0 : index
    %c0_117 = arith.constant 0 : index
    %113 = vector.load %arg7[%c2_115, %c0_116, %c0_117] : memref<4x8x288xf32, #tpu.memory_space<vmem>>, vector<1x8x288xf32>
    %114 = vector.shape_cast %113 : vector<1x8x288xf32> to vector<8x288xf32>
    %115 = arith.addf %114, %112 : vector<8x288xf32>
    %c2_118 = arith.constant 2 : index
    %c0_119 = arith.constant 0 : index
    %c0_120 = arith.constant 0 : index
    %116 = vector.load %arg7[%c2_118, %c0_119, %c0_120] : memref<4x8x288xf32, #tpu.memory_space<vmem>>, vector<1x8x288xf32>
    %117 = vector.shape_cast %116 : vector<1x8x288xf32> to vector<8x288xf32>
    %118 = vector.shape_cast %115 : vector<8x288xf32> to vector<1x8x288xf32>
    tpu.vector_store %arg7[%c2_118, %c0_119, %c0_120], %118 {strides = array<i32>} : memref<4x8x288xf32, #tpu.memory_space<vmem>>, vector<1x8x288xf32>,
    %c0_121 = arith.constant 0 : index
    %c0_122 = arith.constant 0 : index
    %c37 = arith.constant 37 : index
    %119 = vector.load %arg2[%c0_121, %c0_122, %c37] : memref<1x8x342xbf16, #tpu.memory_space<vmem>>, vector<1x8x288xbf16>
    %120 = vector.shape_cast %119 : vector<1x8x288xbf16> to vector<8x288xbf16>
    %c11 = arith.constant 11 : index
    %c0_123 = arith.constant 0 : index
    %c0_124 = arith.constant 0 : index
    %121 = vector.load %arg3[%c11, %c0_123, %c0_124] : memref<16x8x8xbf16, #tpu.memory_space<vmem>>, vector<1x8x8xbf16>
    %122 = vector.shape_cast %121 : vector<1x8x8xbf16> to vector<8x8xbf16>
    %cst_125 = arith.constant dense<0.000000e+00> : vector<8x288xf32>
    %123 = tpu.matmul %122, %120, %cst_125 {dimension_numbers = #tpu.dot_dimension_numbers<[1], [0], [0], [1], [0, 0, 1, 1], [], []>} : vector<8x8xbf16>, vector<8x288xbf16>, vector<8x288xf32> -> vector<8x288xf32>
    %c2_126 = arith.constant 2 : index
    %c0_127 = arith.constant 0 : index
    %c0_128 = arith.constant 0 : index
    %124 = vector.load %arg7[%c2_126, %c0_127, %c0_128] : memref<4x8x288xf32, #tpu.memory_space<vmem>>, vector<1x8x288xf32>
    %125 = vector.shape_cast %124 : vector<1x8x288xf32> to vector<8x288xf32>
    %126 = arith.addf %125, %123 : vector<8x288xf32>
    %c2_129 = arith.constant 2 : index
    %c0_130 = arith.constant 0 : index
    %c0_131 = arith.constant 0 : index
    %127 = vector.load %arg7[%c2_129, %c0_130, %c0_131] : memref<4x8x288xf32, #tpu.memory_space<vmem>>, vector<1x8x288xf32>
    %128 = vector.shape_cast %127 : vector<1x8x288xf32> to vector<8x288xf32>
    %129 = vector.shape_cast %126 : vector<8x288xf32> to vector<1x8x288xf32>
    tpu.vector_store %arg7[%c2_129, %c0_130, %c0_131], %129 {strides = array<i32>} : memref<4x8x288xf32, #tpu.memory_space<vmem>>, vector<1x8x288xf32>,
    %c14 = arith.constant 14 : index
    %c0_132 = arith.constant 0 : index
    %c0_133 = arith.constant 0 : index
    %130 = vector.load %arg3[%c14, %c0_132, %c0_133] : memref<16x8x8xbf16, #tpu.memory_space<vmem>>, vector<1x8x8xbf16>
    %131 = vector.shape_cast %130 : vector<1x8x8xbf16> to vector<8x8xbf16>
    %cst_134 = arith.constant dense<0.000000e+00> : vector<8x288xf32>
    %132 = tpu.matmul %131, %120, %cst_134 {dimension_numbers = #tpu.dot_dimension_numbers<[1], [0], [0], [1], [0, 0, 1, 1], [], []>} : vector<8x8xbf16>, vector<8x288xbf16>, vector<8x288xf32> -> vector<8x288xf32>
    %c3_135 = arith.constant 3 : index
    %c0_136 = arith.constant 0 : index
    %c0_137 = arith.constant 0 : index
    %133 = vector.load %arg7[%c3_135, %c0_136, %c0_137] : memref<4x8x288xf32, #tpu.memory_space<vmem>>, vector<1x8x288xf32>
    %134 = vector.shape_cast %133 : vector<1x8x288xf32> to vector<8x288xf32>
    %135 = arith.addf %134, %132 : vector<8x288xf32>
    %c3_138 = arith.constant 3 : index
    %c0_139 = arith.constant 0 : index
    %c0_140 = arith.constant 0 : index
    %136 = vector.load %arg7[%c3_138, %c0_139, %c0_140] : memref<4x8x288xf32, #tpu.memory_space<vmem>>, vector<1x8x288xf32>
    %137 = vector.shape_cast %136 : vector<1x8x288xf32> to vector<8x288xf32>
    %138 = vector.shape_cast %135 : vector<8x288xf32> to vector<1x8x288xf32>
    tpu.vector_store %arg7[%c3_138, %c0_139, %c0_140], %138 {strides = array<i32>} : memref<4x8x288xf32, #tpu.memory_space<vmem>>, vector<1x8x288xf32>,
    %c0_141 = arith.constant 0 : index
    %c0_142 = arith.constant 0 : index
    %c38 = arith.constant 38 : index
    %139 = vector.load %arg2[%c0_141, %c0_142, %c38] : memref<1x8x342xbf16, #tpu.memory_space<vmem>>, vector<1x8x288xbf16>
    %140 = vector.shape_cast %139 : vector<1x8x288xbf16> to vector<8x288xbf16>
    %c15 = arith.constant 15 : index
    %c0_143 = arith.constant 0 : index
    %c0_144 = arith.constant 0 : index
    %141 = vector.load %arg3[%c15, %c0_143, %c0_144] : memref<16x8x8xbf16, #tpu.memory_space<vmem>>, vector<1x8x8xbf16>
    %142 = vector.shape_cast %141 : vector<1x8x8xbf16> to vector<8x8xbf16>
    %cst_145 = arith.constant dense<0.000000e+00> : vector<8x288xf32>
    %143 = tpu.matmul %142, %140, %cst_145 {dimension_numbers = #tpu.dot_dimension_numbers<[1], [0], [0], [1], [0, 0, 1, 1], [], []>} : vector<8x8xbf16>, vector<8x288xbf16>, vector<8x288xf32> -> vector<8x288xf32>
    %c3_146 = arith.constant 3 : index
    %c0_147 = arith.constant 0 : index
    %c0_148 = arith.constant 0 : index
    %144 = vector.load %arg7[%c3_146, %c0_147, %c0_148] : memref<4x8x288xf32, #tpu.memory_space<vmem>>, vector<1x8x288xf32>
    %145 = vector.shape_cast %144 : vector<1x8x288xf32> to vector<8x288xf32>
    %146 = arith.addf %145, %143 : vector<8x288xf32>
    %c3_149 = arith.constant 3 : index
    %c0_150 = arith.constant 0 : index
    %c0_151 = arith.constant 0 : index
    %147 = vector.load %arg7[%c3_149, %c0_150, %c0_151] : memref<4x8x288xf32, #tpu.memory_space<vmem>>, vector<1x8x288xf32>
    %148 = vector.shape_cast %147 : vector<1x8x288xf32> to vector<8x288xf32>
    %149 = vector.shape_cast %146 : vector<8x288xf32> to vector<1x8x288xf32>
    tpu.vector_store %arg7[%c3_149, %c0_150, %c0_151], %149 {strides = array<i32>} : memref<4x8x288xf32, #tpu.memory_space<vmem>>, vector<1x8x288xf32>,
    %c0_152 = arith.constant 0 : index
    %c0_153 = arith.constant 0 : index
    %150 = vector.load %arg5[%c0_152, %c0_153] : memref<1x288xf32, #tpu.memory_space<vmem>>, vector<1x288xf32>
    %c0_154 = arith.constant 0 : index
    %c0_155 = arith.constant 0 : index
    %c0_156 = arith.constant 0 : index
    %151 = vector.load %arg7[%c0_154, %c0_155, %c0_156] : memref<4x8x288xf32, #tpu.memory_space<vmem>>, vector<1x8x288xf32>
    %152 = vector.shape_cast %151 : vector<1x8x288xf32> to vector<8x288xf32>
    %153 = vector.broadcast %150 : vector<1x288xf32> to vector<8x288xf32>
    %154 = arith.mulf %152, %153 : vector<8x288xf32>
    %cst_157 = arith.constant dense<0.000000e+00> : vector<8xf32>
    %155 = vector.multi_reduction <add>, %154, %cst_157 [1] : vector<8x288xf32> to vector<8xf32>
    %156 = vector.shape_cast %155 : vector<8xf32> to vector<8x1xf32>
    %157 = arith.mulf %154, %152 : vector<8x288xf32>
    %cst_158 = arith.constant dense<0.000000e+00> : vector<8xf32>
    %158 = vector.multi_reduction <add>, %157, %cst_158 [1] : vector<8x288xf32> to vector<8xf32>
    %159 = vector.shape_cast %158 : vector<8xf32> to vector<8x1xf32>
    %c1_159 = arith.constant 1 : index
    %c0_160 = arith.constant 0 : index
    %c0_161 = arith.constant 0 : index
    %160 = vector.load %arg7[%c1_159, %c0_160, %c0_161] : memref<4x8x288xf32, #tpu.memory_space<vmem>>, vector<1x8x288xf32>
    %161 = vector.shape_cast %160 : vector<1x8x288xf32> to vector<8x288xf32>
    %162 = vector.broadcast %150 : vector<1x288xf32> to vector<8x288xf32>
    %163 = arith.mulf %161, %162 : vector<8x288xf32>
    %cst_162 = arith.constant dense<0.000000e+00> : vector<8xf32>
    %164 = vector.multi_reduction <add>, %163, %cst_162 [1] : vector<8x288xf32> to vector<8xf32>
    %165 = vector.shape_cast %164 : vector<8xf32> to vector<8x1xf32>
    %166 = arith.mulf %163, %161 : vector<8x288xf32>
    %cst_163 = arith.constant dense<0.000000e+00> : vector<8xf32>
    %167 = vector.multi_reduction <add>, %166, %cst_163 [1] : vector<8x288xf32> to vector<8xf32>
    %168 = vector.shape_cast %167 : vector<8xf32> to vector<8x1xf32>
    %169 = arith.addf %156, %165 : vector<8x1xf32>
    %170 = arith.addf %159, %168 : vector<8x1xf32>
    %c2_164 = arith.constant 2 : index
    %c0_165 = arith.constant 0 : index
    %c0_166 = arith.constant 0 : index
    %171 = vector.load %arg7[%c2_164, %c0_165, %c0_166] : memref<4x8x288xf32, #tpu.memory_space<vmem>>, vector<1x8x288xf32>
    %172 = vector.shape_cast %171 : vector<1x8x288xf32> to vector<8x288xf32>
    %173 = vector.broadcast %150 : vector<1x288xf32> to vector<8x288xf32>
    %174 = arith.mulf %172, %173 : vector<8x288xf32>
    %cst_167 = arith.constant dense<0.000000e+00> : vector<8xf32>
    %175 = vector.multi_reduction <add>, %174, %cst_167 [1] : vector<8x288xf32> to vector<8xf32>
    %176 = vector.shape_cast %175 : vector<8xf32> to vector<8x1xf32>
    %177 = arith.mulf %174, %172 : vector<8x288xf32>
    %cst_168 = arith.constant dense<0.000000e+00> : vector<8xf32>
    %178 = vector.multi_reduction <add>, %177, %cst_168 [1] : vector<8x288xf32> to vector<8xf32>
    %179 = vector.shape_cast %178 : vector<8xf32> to vector<8x1xf32>
    %180 = arith.addf %169, %176 : vector<8x1xf32>
    %181 = arith.addf %170, %179 : vector<8x1xf32>
    %c3_169 = arith.constant 3 : index
    %c0_170 = arith.constant 0 : index
    %c0_171 = arith.constant 0 : index
    %182 = vector.load %arg7[%c3_169, %c0_170, %c0_171] : memref<4x8x288xf32, #tpu.memory_space<vmem>>, vector<1x8x288xf32>
    %183 = vector.shape_cast %182 : vector<1x8x288xf32> to vector<8x288xf32>
    %184 = vector.broadcast %150 : vector<1x288xf32> to vector<8x288xf32>
    %185 = arith.mulf %183, %184 : vector<8x288xf32>
    %cst_172 = arith.constant dense<0.000000e+00> : vector<8xf32>
    %186 = vector.multi_reduction <add>, %185, %cst_172 [1] : vector<8x288xf32> to vector<8xf32>
    %187 = vector.shape_cast %186 : vector<8xf32> to vector<8x1xf32>
    %188 = arith.mulf %185, %183 : vector<8x288xf32>
    %cst_173 = arith.constant dense<0.000000e+00> : vector<8xf32>
    %189 = vector.multi_reduction <add>, %188, %cst_173 [1] : vector<8x288xf32> to vector<8xf32>
    %190 = vector.shape_cast %189 : vector<8xf32> to vector<8x1xf32>
    %191 = arith.addf %180, %187 : vector<8x1xf32>
    %192 = arith.addf %181, %190 : vector<8x1xf32>
    %cst_174 = arith.constant 9.765625E-4 : f32
    %193 = vector.broadcast %cst_174 : f32 to vector<8x1xf32>
    %194 = arith.mulf %191, %193 : vector<8x1xf32>
    %cst_175 = arith.constant 9.765625E-4 : f32
    %195 = vector.broadcast %cst_175 : f32 to vector<8x1xf32>
    %196 = arith.mulf %192, %195 : vector<8x1xf32>
    %197 = arith.mulf %194, %194 : vector<8x1xf32>
    %198 = arith.subf %196, %197 : vector<8x1xf32>
    %cst_176 = arith.constant 9.99999974E-6 : f32
    %199 = vector.broadcast %cst_176 : f32 to vector<8x1xf32>
    %200 = arith.addf %198, %199 : vector<8x1xf32>
    %201 = math.rsqrt %200 : vector<8x1xf32>
    %c0_177 = arith.constant 0 : index
    %c1_178 = arith.constant 1 : index
    %202 = vector.load %arg4[%c0_177, %c1_178] : memref<8x3xf32, #tpu.memory_space<vmem>>, vector<8x1xf32>
    %203 = arith.mulf %201, %202 : vector<8x1xf32>
    %c0_179 = arith.constant 0 : index
    %c2_180 = arith.constant 2 : index
    %204 = vector.load %arg4[%c0_179, %c2_180] : memref<8x3xf32, #tpu.memory_space<vmem>>, vector<8x1xf32>
    %205 = arith.mulf %194, %203 : vector<8x1xf32>
    %206 = arith.subf %204, %205 : vector<8x1xf32>
    %c0_181 = arith.constant 0 : index
    %c0_182 = arith.constant 0 : index
    %c0_183 = arith.constant 0 : index
    %207 = vector.load %arg7[%c0_181, %c0_182, %c0_183] : memref<4x8x288xf32, #tpu.memory_space<vmem>>, vector<1x8x288xf32>
    %208 = vector.shape_cast %207 : vector<1x8x288xf32> to vector<8x288xf32>
    %209 = vector.broadcast %203 : vector<8x1xf32> to vector<8x288xf32>
    %210 = arith.mulf %208, %209 : vector<8x288xf32>
    %211 = vector.broadcast %206 : vector<8x1xf32> to vector<8x288xf32>
    %212 = arith.addf %210, %211 : vector<8x288xf32>
    %213 = arith.truncf %212 : vector<8x288xf32> to vector<8x288xbf16>
    %c0_184 = arith.constant 0 : index
    %c0_185 = arith.constant 0 : index
    %c0_186 = arith.constant 0 : index
    %c0_187 = arith.constant 0 : index
    %214 = vector.load %arg6[%c0_184, %c0_185, %c0_186, %c0_187] : memref<1x4x8x288xbf16, #tpu.memory_space<vmem>>, vector<1x1x8x288xbf16>
    %215 = vector.shape_cast %214 : vector<1x1x8x288xbf16> to vector<8x288xbf16>
    %216 = vector.shape_cast %213 : vector<8x288xbf16> to vector<1x1x8x288xbf16>
    tpu.vector_store %arg6[%c0_184, %c0_185, %c0_186, %c0_187], %216 {strides = array<i32>} : memref<1x4x8x288xbf16, #tpu.memory_space<vmem>>, vector<1x1x8x288xbf16>,
    %c1_188 = arith.constant 1 : index
    %c0_189 = arith.constant 0 : index
    %c0_190 = arith.constant 0 : index
    %217 = vector.load %arg7[%c1_188, %c0_189, %c0_190] : memref<4x8x288xf32, #tpu.memory_space<vmem>>, vector<1x8x288xf32>
    %218 = vector.shape_cast %217 : vector<1x8x288xf32> to vector<8x288xf32>
    %219 = vector.broadcast %203 : vector<8x1xf32> to vector<8x288xf32>
    %220 = arith.mulf %218, %219 : vector<8x288xf32>
    %221 = vector.broadcast %206 : vector<8x1xf32> to vector<8x288xf32>
    %222 = arith.addf %220, %221 : vector<8x288xf32>
    %223 = arith.truncf %222 : vector<8x288xf32> to vector<8x288xbf16>
    %c0_191 = arith.constant 0 : index
    %c1_192 = arith.constant 1 : index
    %c0_193 = arith.constant 0 : index
    %c0_194 = arith.constant 0 : index
    %224 = vector.load %arg6[%c0_191, %c1_192, %c0_193, %c0_194] : memref<1x4x8x288xbf16, #tpu.memory_space<vmem>>, vector<1x1x8x288xbf16>
    %225 = vector.shape_cast %224 : vector<1x1x8x288xbf16> to vector<8x288xbf16>
    %226 = vector.shape_cast %223 : vector<8x288xbf16> to vector<1x1x8x288xbf16>
    tpu.vector_store %arg6[%c0_191, %c1_192, %c0_193, %c0_194], %226 {strides = array<i32>} : memref<1x4x8x288xbf16, #tpu.memory_space<vmem>>, vector<1x1x8x288xbf16>,
    %c2_195 = arith.constant 2 : index
    %c0_196 = arith.constant 0 : index
    %c0_197 = arith.constant 0 : index
    %227 = vector.load %arg7[%c2_195, %c0_196, %c0_197] : memref<4x8x288xf32, #tpu.memory_space<vmem>>, vector<1x8x288xf32>
    %228 = vector.shape_cast %227 : vector<1x8x288xf32> to vector<8x288xf32>
    %229 = vector.broadcast %203 : vector<8x1xf32> to vector<8x288xf32>
    %230 = arith.mulf %228, %229 : vector<8x288xf32>
    %231 = vector.broadcast %206 : vector<8x1xf32> to vector<8x288xf32>
    %232 = arith.addf %230, %231 : vector<8x288xf32>
    %233 = arith.truncf %232 : vector<8x288xf32> to vector<8x288xbf16>
    %c0_198 = arith.constant 0 : index
    %c2_199 = arith.constant 2 : index
    %c0_200 = arith.constant 0 : index
    %c0_201 = arith.constant 0 : index
    %234 = vector.load %arg6[%c0_198, %c2_199, %c0_200, %c0_201] : memref<1x4x8x288xbf16, #tpu.memory_space<vmem>>, vector<1x1x8x288xbf16>
    %235 = vector.shape_cast %234 : vector<1x1x8x288xbf16> to vector<8x288xbf16>
    %236 = vector.shape_cast %233 : vector<8x288xbf16> to vector<1x1x8x288xbf16>
    tpu.vector_store %arg6[%c0_198, %c2_199, %c0_200, %c0_201], %236 {strides = array<i32>} : memref<1x4x8x288xbf16, #tpu.memory_space<vmem>>, vector<1x1x8x288xbf16>,
    %c3_202 = arith.constant 3 : index
    %c0_203 = arith.constant 0 : index
    %c0_204 = arith.constant 0 : index
    %237 = vector.load %arg7[%c3_202, %c0_203, %c0_204] : memref<4x8x288xf32, #tpu.memory_space<vmem>>, vector<1x8x288xf32>
    %238 = vector.shape_cast %237 : vector<1x8x288xf32> to vector<8x288xf32>
    %239 = vector.broadcast %203 : vector<8x1xf32> to vector<8x288xf32>
    %240 = arith.mulf %238, %239 : vector<8x288xf32>
    %241 = vector.broadcast %206 : vector<8x1xf32> to vector<8x288xf32>
    %242 = arith.addf %240, %241 : vector<8x288xf32>
    %243 = arith.truncf %242 : vector<8x288xf32> to vector<8x288xbf16>
    %c0_205 = arith.constant 0 : index
    %c3_206 = arith.constant 3 : index
    %c0_207 = arith.constant 0 : index
    %c0_208 = arith.constant 0 : index
    %244 = vector.load %arg6[%c0_205, %c3_206, %c0_207, %c0_208] : memref<1x4x8x288xbf16, #tpu.memory_space<vmem>>, vector<1x1x8x288xbf16>
    %245 = vector.shape_cast %244 : vector<1x1x8x288xbf16> to vector<8x288xbf16>
    %246 = vector.shape_cast %243 : vector<8x288xbf16> to vector<1x1x8x288xbf16>
    tpu.vector_store %arg6[%c0_205, %c3_206, %c0_207, %c0_208], %246 {strides = array<i32>} : memref<1x4x8x288xbf16, #tpu.memory_space<vmem>>, vector<1x1x8x288xbf16>,
    return
  }
  func.func @transform_0(%arg0: i32, %arg1: i32) -> (i32, i32, i32) {
    %c0_i32 = arith.constant 0 : i32
    %c0_i32_0 = arith.constant 0 : i32
    %c0_i32_1 = arith.constant 0 : i32
    return %arg0, %c0_i32, %c0_i32_0 : i32, i32, i32
  }
  func.func @transform_1(%arg0: i32, %arg1: i32) -> (i32, i32, i32) {
    %c0_i32 = arith.constant 0 : i32
    %c0_i32_0 = arith.constant 0 : i32
    %c0_i32_1 = arith.constant 0 : i32
    return %c0_i32, %arg1, %c0_i32_0 : i32, i32, i32
  }
  func.func @transform_2(%arg0: i32, %arg1: i32) -> (i32, i32) {
    %c0_i32 = arith.constant 0 : i32
    %c0_i32_0 = arith.constant 0 : i32
    return %arg1, %c0_i32 : i32, i32
  }
  func.func @transform_3(%arg0: i32, %arg1: i32) -> (i32, i32) {
    %c0_i32 = arith.constant 0 : i32
    %c0_i32_0 = arith.constant 0 : i32
    %c0_i32_1 = arith.constant 0 : i32
    return %c0_i32, %c0_i32_0 : i32, i32
  }
  func.func @transform_4(%arg0: i32, %arg1: i32) -> (i32, i32, i32, i32) {
    %c0_i32 = arith.constant 0 : i32
    %c0_i32_0 = arith.constant 0 : i32
    %c0_i32_1 = arith.constant 0 : i32
    return %arg0, %c0_i32, %arg1, %c0_i32_0 : i32, i32, i32, i32
  }
}

</mosaic_0001>

<llo_original>
// kernel: tpu_custom_call.1
$region0: #{tpu_custom_call.1}
  #allocation0 [shape = 'u32[]', space=smem, size = 0x4, offset = 0x4, fixed_abs, tag = 'smem constant byte address 0x4 - core index']
  #allocation1 [shape = 'u32[144,128]{1,0:T(1,128)}', space=vmem, size = 0x12000, scoped, tag = 'internal scratch']
  #allocation2 [shape = 'f32[4,8,288]{2,1,0:T(8,128)}', space=vmem, size = 0xc000, scoped, tag = 'scratch operand']
  %s0 = inlined_call_operand.vmem [shape: bf16[2,8,342], index: 0, kind: input, shape index: {}]
  %s1 = inlined_call_operand.vmem [shape: bf16[16,8,8], index: 1, kind: input, shape index: {}]
  %s2 = inlined_call_operand.vmem [shape: f32[8,3], index: 2, kind: input, shape index: {}]
  %s3 = inlined_call_operand.vmem [shape: f32[1,288], index: 3, kind: input, shape index: {}]
  %s4 = inlined_call_operand.hbm [shape: bf16[2,4,8,288], index: 4, kind: output, shape index: {}]
  %s5 = sld [smem:[#allocation0]]
  $region49: #{tpu_custom_call.1} parent=0
    _
  %s7 = ssub.s32 1, %s5
  %s8 = scalar_select 0, %s7, %s5
  $region1: #{tpu_custom_call.1} parent=0
    #allocation3 [shape = 'u8[49152]{0}', space=vmem, size = 0xc000, scoped, tag = 'output window, operand 0']
    #allocation4 [shape = 's32[2]{0}', space=sflag, size = 0x8, scoped, tag = 'scoped memory for tpu_custom_call.1']
    %9 = vsyncpa [#allocation4], 0
    %s10 = scalar_lea.sflag [#allocation4], 1
    %11 = vsyncpa %s10, 0
    loop: start=0, step=1, limit=4
    $region2: #{tpu_custom_call.1} parent=1 // loop_pre_header
      _
    $region3: #{tpu_custom_call.1} parent=1 // loop_header
      %s13 = sphi 0, %s17
      %p14 = scmp.ge.s32.totalorder %s13, 4
      %s20 = sphi 0, %s32
      %s21 = sphi 0, %s28
      %s22 = sphi 0, %s20
      %s23 = sphi 0, %s21
      %s24 = sphi 0, %s22
      %s25 = sphi 0, %s23
      %s35 = sphi 0, %s37
      %s38 = sphi 0, %s35
      %s39 = sphi 0, %s38
      %s55 = sphi 0, %s39
      %s61 = sphi 0, %s63
      %s64 = sphi 0, %s61
      %s65 = sphi 0, %s64
      %s81 = sphi 0, %s65
      %s87 = sphi 0, %s89
      %s90 = sphi 0, %s87
      %s91 = sphi 0, %s90
      %s107 = sphi 0, %s91
      %s111 = sphi 0, %s111
      %s113 = sphi 0, %s111
      %s114 = sphi 0, %s113
      %s128 = sphi 0, %s114
      %s136 = sphi 0, %s138
      %s139 = sphi 0, %s136
      %s140 = sphi 0, %s139
      %s156 = sphi 0, %s140
    $region4: #{tpu_custom_call.1} parent=1 // loop_header_branch
      %16 = sbr.rel (%p14) target = $region8
    $region5: #{tpu_custom_call.1} parent=1 // loop_body
      %s18 = ssub.s32 %s13, 1
      %s19 = ssub.s32 %s13, 2
      %s26 = sadd.s32 1, %s21
      %p27 = scmp.ge.s32.totalorder %s26, 1
      %s28 = scalar_select %p27, 0, %s26
      %s29 = sadd.s32 1, %s20
      %s30 = scalar_select %p27, %s29, %s20
      %p31 = scmp.ge.s32.totalorder %s30, 2
      %s32 = scalar_select %p31, 0, %s30
      %s33 = ssub.s32 %s20, %s32
      %p34 = scmp.eq.s32.totalorder %s33, 0
      %s36 = sadd.s32 %s35, 1
      %s37 = scalar_select %p34, %s35, %s36
      %p40 = pneg %p34
      %p41 = scmp.eq.s32.totalorder %s13, 1
      %p42 = por %p40, %p41
      %p43 = scmp.ne.s32.totalorder %s35, %s38
      %p44 = scmp.eq.s32.totalorder %s13, 0
      %p45 = por %p43, %p44
      %p46 = scmp.ne.s32.totalorder %s35, %s38
      %p47 = scmp.eq.s32.totalorder %s18, 1
      %p48 = por %p46, %p47
      %p49 = scmp.ne.s32.totalorder %s38, %s39
      %p50 = scmp.eq.s32.totalorder %s18, 0
      %p51 = por %p49, %p50
      %p52 = scmp.ne.s32.totalorder %s38, %s39
      %p53 = scmp.eq.s32.totalorder %s19, 1
      %p54 = por %p52, %p53
      %p56 = scmp.ne.s32.totalorder %s39, %s55
      %p57 = scmp.eq.s32.totalorder %s19, 0
      %p58 = por %p56, %p57
      %s59 = ssub.s32 %s21, %s28
      %p60 = scmp.eq.s32.totalorder %s59, 0
      %s62 = sadd.s32 %s61, 1
      %s63 = scalar_select %p60, %s61, %s62
      %p66 = pneg %p60
      %p67 = scmp.eq.s32.totalorder %s13, 1
      %p68 = por %p66, %p67
      %p69 = scmp.ne.s32.totalorder %s61, %s64
      %p70 = scmp.eq.s32.totalorder %s13, 0
      %p71 = por %p69, %p70
      %p72 = scmp.ne.s32.totalorder %s61, %s64
      %p73 = scmp.eq.s32.totalorder %s18, 1
      %p74 = por %p72, %p73
      %p75 = scmp.ne.s32.totalorder %s64, %s65
      %p76 = scmp.eq.s32.totalorder %s18, 0
      %p77 = por %p75, %p76
      %p78 = scmp.ne.s32.totalorder %s64, %s65
      %p79 = scmp.eq.s32.totalorder %s19, 1
      %p80 = por %p78, %p79
      %p82 = scmp.ne.s32.totalorder %s65, %s81
      %p83 = scmp.eq.s32.totalorder %s19, 0
      %p84 = por %p82, %p83
      %s85 = ssub.s32 %s21, %s28
      %p86 = scmp.eq.s32.totalorder %s85, 0
      %s88 = sadd.s32 %s87, 1
      %s89 = scalar_select %p86, %s87, %s88
      %p92 = pneg %p86
      %p93 = scmp.eq.s32.totalorder %s13, 1
      %p94 = por %p92, %p93
      %p95 = scmp.ne.s32.totalorder %s87, %s90
      %p96 = scmp.eq.s32.totalorder %s13, 0
      %p97 = por %p95, %p96
      %p98 = scmp.ne.s32.totalorder %s87, %s90
      %p99 = scmp.eq.s32.totalorder %s18, 1
      %p100 = por %p98, %p99
      %p101 = scmp.ne.s32.totalorder %s90, %s91
      %p102 = scmp.eq.s32.totalorder %s18, 0
      %p103 = por %p101, %p102
      %p104 = scmp.ne.s32.totalorder %s90, %s91
      %p105 = scmp.eq.s32.totalorder %s19, 1
      %p106 = por %p104, %p105
      %p108 = scmp.ne.s32.totalorder %s91, %s107
      %p109 = scmp.eq.s32.totalorder %s19, 0
      %p110 = por %p108, %p109
      %s112 = sadd.s32 %s111, 1
      %p115 = scmp.eq.s32.totalorder %s13, 1
      %p116 = scmp.ne.s32.totalorder %s111, %s113
      %p117 = scmp.eq.s32.totalorder %s13, 0
      %p118 = por %p116, %p117
      %p119 = scmp.ne.s32.totalorder %s111, %s113
      %p120 = scmp.eq.s32.totalorder %s18, 1
      %p121 = por %p119, %p120
      %p122 = scmp.ne.s32.totalorder %s113, %s114
      %p123 = scmp.eq.s32.totalorder %s18, 0
      %p124 = por %p122, %p123
      %p125 = scmp.ne.s32.totalorder %s113, %s114
      %p126 = scmp.eq.s32.totalorder %s19, 1
      %p127 = por %p125, %p126
      %p129 = scmp.ne.s32.totalorder %s114, %s128
      %p130 = scmp.eq.s32.totalorder %s19, 0
      %p131 = por %p129, %p130
      %s132 = ssub.s32 %s20, %s32
      %s133 = ssub.s32 %s21, %s28
      %s134 = sor.u32 %s132, %s133
      %p135 = scmp.eq.s32.totalorder %s134, 0
      %s137 = sadd.s32 %s136, 1
      %s138 = scalar_select %p135, %s136, %s137
      %p141 = pneg %p135
      %p142 = scmp.eq.s32.totalorder %s13, 1
      %p143 = por %p141, %p142
      %p144 = scmp.ne.s32.totalorder %s136, %s139
      %p145 = scmp.eq.s32.totalorder %s13, 0
      %p146 = por %p144, %p145
      %p147 = scmp.ne.s32.totalorder %s136, %s139
      %p148 = scmp.eq.s32.totalorder %s18, 1
      %p149 = por %p147, %p148
      %p150 = scmp.ne.s32.totalorder %s139, %s140
      %p151 = scmp.eq.s32.totalorder %s18, 0
      %p152 = por %p150, %p151
      %p153 = scmp.ne.s32.totalorder %s139, %s140
      %p154 = scmp.eq.s32.totalorder %s19, 1
      %p155 = por %p153, %p154
      %p157 = scmp.ne.s32.totalorder %s140, %s156
      %p158 = scmp.eq.s32.totalorder %s19, 0
      %p159 = por %p157, %p158
      %p160 = scmp.le.s32.totalorder 1, %s13
      %p161 = scmp.lt.s32.totalorder %s13, 3
      %p162 = pnand %p160, %p161
      %p163 = pneg %p162
      // Predicated region
      $region9: #{tpu_custom_call.1} parent=5 // pred_check
        _
      $region10: #{tpu_custom_call.1} parent=5 // pred_check_branch
        %165 = sbr.rel (%p162) target = $region12
      $region11: #{tpu_custom_call.1} parent=5 // pred_region
        %s166 = ssub.s32 %s13, 1
        // Predicated region
        $region13: #{tpu_custom_call.1} parent=11 // pred_check
          %p167 = pneg %p77
        $region14: #{tpu_custom_call.1} parent=11 // pred_check_branch
          %169 = sbr.rel (%p167) target = $region16
        $region15: #{tpu_custom_call.1} parent=11 // pred_region
          %p170 = scmp.lt.s32.totalorder %s23, 0
          %s171 = scalar_select %p170, %s23, 0
          %s172 = smul.addr %s171, 4
          %s173 = scalar_lea.vmem %s1, %s172
        $region16: #{tpu_custom_call.1} parent=11 // pred_fallthru
          _
        // Predicated region
        $region17: #{tpu_custom_call.1} parent=11 // pred_check
          %p174 = pneg %p103
        $region18: #{tpu_custom_call.1} parent=11 // pred_check_branch
          %176 = sbr.rel (%p174) target = $region20
        $region19: #{tpu_custom_call.1} parent=11 // pred_region
          %p177 = scmp.lt.s32.totalorder %s23, 0
          %s178 = scalar_select %p177, %s23, 0
          %s179 = smul.addr %s178, 8
          %s180 = scalar_lea.vmem %s2, %s179
        $region20: #{tpu_custom_call.1} parent=11 // pred_fallthru
          _
        // Predicated region
        $region21: #{tpu_custom_call.1} parent=11 // pred_check
          %p181 = pneg %p124
        $region22: #{tpu_custom_call.1} parent=11 // pred_check_branch
          %183 = sbr.rel (%p181) target = $region24
        $region23: #{tpu_custom_call.1} parent=11 // pred_region
          _
        $region24: #{tpu_custom_call.1} parent=11 // pred_fallthru
          _
      $region12: #{tpu_custom_call.1} parent=5 // pred_fallthru
        _
      %p184 = scmp.lt.s32.totalorder %s13, 2
      // Predicated region
      $region25: #{tpu_custom_call.1} parent=5 // pred_check
        %p185 = pneg %p184
      $region26: #{tpu_custom_call.1} parent=5 // pred_check_branch
        %187 = sbr.rel (%p185) target = $region28
      $region27: #{tpu_custom_call.1} parent=5 // pred_region
        // Predicated region
        $region29: #{tpu_custom_call.1} parent=27 // pred_check
          %p188 = pneg %p45
        $region30: #{tpu_custom_call.1} parent=27 // pred_check_branch
          %190 = sbr.rel (%p188) target = $region32
        $region31: #{tpu_custom_call.1} parent=27 // pred_region
          %p191 = scmp.lt.s32.totalorder %s20, 1
          %s192 = scalar_select %p191, %s20, 1
          %s193 = smul.addr %s192, 3
          %s194 = smul.addr %s193, 4
          %s195 = scalar_lea.vmem %s0, %s194
        $region32: #{tpu_custom_call.1} parent=27 // pred_fallthru
          _
      $region28: #{tpu_custom_call.1} parent=5 // pred_fallthru
        _
      %p196 = scmp.le.s32.totalorder 1, %s13
      %p197 = scmp.lt.s32.totalorder %s13, 3
      %p198 = pnand %p196, %p197
      %p199 = pneg %p198
      // Predicated region
      $region33: #{tpu_custom_call.1} parent=5 // pred_check
        _
      $region34: #{tpu_custom_call.1} parent=5 // pred_check_branch
        %201 = sbr.rel (%p198) target = $region36
      $region35: #{tpu_custom_call.1} parent=5 // pred_region
        %s202 = ssub.s32 %s13, 1
        %p203 = scmp.lt.s32.totalorder %s22, 1
        %s204 = scalar_select %p203, %s22, 1
        %s205 = smul.addr %s204, 3
        %s206 = smul.addr %s205, 4
        %s207 = scalar_lea.vmem %s0, %s206
        %p208 = pneg %p51
        %p209 = pneg %p48
        %p210 = scmp.lt.s32.totalorder %s23, 0
        %s211 = scalar_select %p210, %s23, 0
        %s212 = smul.addr %s211, 4
        %s213 = scalar_lea.vmem %s1, %s212
        %p214 = pneg %p77
        %p215 = pneg %p74
        %p216 = scmp.lt.s32.totalorder %s23, 0
        %s217 = scalar_select %p216, %s23, 0
        %s218 = smul.addr %s217, 8
        %s219 = scalar_lea.vmem %s2, %s218
        %p220 = pneg %p103
        %p221 = pneg %p100
        %p222 = pneg %p124
        %p223 = pneg %p121
        %p224 = pneg %p152
        %p225 = pneg %p149
        %s226 = sand.u32 %s139, 1
        %s227 = scalar_lea.sflag [#allocation4], %s226
        %s228 = sand.u32 %s139, 1
        %s229 = smul.addr %s228, 48
        %s230 = scalar_lea.vmem [#allocation3], %s229
        %p231 = scmp.lt.s32.totalorder %s22, 1
        %s232 = scalar_select %p231, %s22, 1
        %s233 = smul.addr %s232, 3
        %s234 = smul.addr %s233, 4
        %s235 = scalar_lea.vmem %s0, %s234
        %p236 = scmp.lt.s32.totalorder %s23, 0
        %s237 = scalar_select %p236, %s23, 0
        %s238 = smul.addr %s237, 4
        %s239 = scalar_lea.vmem %s1, %s238
        %p240 = scmp.lt.s32.totalorder %s23, 0
        %s241 = scalar_select %p240, %s23, 0
        %s242 = smul.addr %s241, 8
        %s243 = scalar_lea.vmem %s2, %s242
        %v245 = vld [vmem:[%s235] sm:$0xff]
        %v246 = vld [vmem:[%s235 + $0x8] sm:$0xf]
        %v247 = vld [vmem:[%s239] sm:$0xf]
        %v250 = vunpack.c.l.b16 %v245
        %v251 = vunpack.c.h.b16 %v245
        %v252 = vunpack.c.l.b16 %v246
        %v253 = vpack.c.b16 %v250, %v250
        %v254 = vpack.c.b16 %v251, %v251
        %v255 = vpack.c.b16 %v252, %v252
        %vm256 = vcmask 64512
        %v258 = vsel %vm256, %v247, 0
        %vm260 = vcmask 1043456
        %v262 = vsel %vm260, %v253, 0
        %v265 = vsel %vm260, %v254, 0
        %v268 = vsel %vm260, %v255, 0
        %270 = vmatprep.subr.bf16.mxu0 %v265
        %271 = vmatpush1.bf16.msra.mxu0 %v262
        %272 = vmatprep.subr.bf16.mxu0 0
        %273 = vmatpush1.bf16.msra.mxu0 0
        %274 = vmatprep.subr.bf16.mxu0 0
        %275 = vmatpush1.bf16.msra.mxu0 0
        %276 = vmatprep.subr.bf16.mxu0 0
        %277 = vmatpush1.bf16.msra.mxu0 0
        %278 = vmatprep.subr.bf16.mxu0 0
        %279 = vmatpush1.bf16.msra.mxu0 0
        %280 = vmatprep.subr.bf16.mxu0 0
        %281 = vmatpush1.bf16.msra.mxu0 0
        %282 = vmatprep.subr.bf16.mxu0 0
        %283 = vmatpush1.bf16.msra.mxu0 0
        %284 = vmatprep.subr.bf16.mxu0 0
        %285 = vmatpush1.bf16.msra.mxu0 0
        %286 = vmatprep.subr.bf16.mxu0 0
        %287 = vmatpush1.bf16.msra.mxu0 0
        %288 = vmatprep.subr.bf16.mxu0 0
        %289 = vmatpush1.bf16.msra.mxu0 0
        %290 = vmatprep.subr.bf16.mxu0 0
        %291 = vmatpush1.bf16.msra.mxu0 0
        %292 = vmatprep.subr.bf16.mxu0 0
        %293 = vmatpush1.bf16.msra.mxu0 0
        %294 = vmatprep.subr.bf16.mxu0 0
        %295 = vmatpush1.bf16.msra.mxu0 0
        %296 = vmatprep.subr.bf16.mxu0 0
        %297 = vmatpush1.bf16.msra.mxu0 0
        %298 = vmatprep.subr.bf16.mxu0 0
        %299 = vmatpush1.bf16.msra.mxu0 0
        %300 = vmatprep.subr.bf16.mxu0 0
        %301 = vmatpush1.bf16.msra.mxu0 0
        %302 = vmatprep.mubr.bf16.mxu0 0
        %303 = vmatmul.mubr.bf16.gmra.mrb[0].mxu0 %v258
        %v304 = vpop.f32.mrb[0].mxu0
        %v305 = vadd.f32 0.0, %v304
        %v306 = vpop.f32.mrb[0].mxu0
        %v307 = vadd.f32 0.0, %v306
        %v308 = vpop.f32.mrb[0].mxu0
        %v309 = vpop.f32.mrb[0].mxu0
        %310 = vdwg.mxu0
        %311 = vmatprep.subr.bf16.mxu0 0
        %312 = vmatpush1.bf16.msra.mxu0 %v268
        %313 = vmatprep.subr.bf16.mxu0 0
        %314 = vmatpush1.bf16.msra.mxu0 0
        %315 = vmatprep.subr.bf16.mxu0 0
        %316 = vmatpush1.bf16.msra.mxu0 0
        %317 = vmatprep.subr.bf16.mxu0 0
        %318 = vmatpush1.bf16.msra.mxu0 0
        %319 = vmatprep.subr.bf16.mxu0 0
        %320 = vmatpush1.bf16.msra.mxu0 0
        %321 = vmatprep.subr.bf16.mxu0 0
        %322 = vmatpush1.bf16.msra.mxu0 0
        %323 = vmatprep.subr.bf16.mxu0 0
        %324 = vmatpush1.bf16.msra.mxu0 0
        %325 = vmatprep.subr.bf16.mxu0 0
        %326 = vmatpush1.bf16.msra.mxu0 0
        %327 = vmatprep.subr.bf16.mxu0 0
        %328 = vmatpush1.bf16.msra.mxu0 0
        %329 = vmatprep.subr.bf16.mxu0 0
        %330 = vmatpush1.bf16.msra.mxu0 0
        %331 = vmatprep.subr.bf16.mxu0 0
        %332 = vmatpush1.bf16.msra.mxu0 0
        %333 = vmatprep.subr.bf16.mxu0 0
        %334 = vmatpush1.bf16.msra.mxu0 0
        %335 = vmatprep.subr.bf16.mxu0 0
        %336 = vmatpush1.bf16.msra.mxu0 0
        %337 = vmatprep.subr.bf16.mxu0 0
        %338 = vmatpush1.bf16.msra.mxu0 0
        %339 = vmatprep.subr.bf16.mxu0 0
        %340 = vmatpush1.bf16.msra.mxu0 0
        %341 = vmatprep.subr.bf16.mxu0 0
        %342 = vmatpush1.bf16.msra.mxu0 0
        %343 = vmatprep.mubr.bf16.mxu0 0
        %344 = vmatmul.mubr.bf16.gmra.mrb[0].mxu0 %v258
        %v345 = vpop.f32.mrb[0].mxu0
        %v346 = vadd.f32 0.0, %v345
        %v347 = vpop.f32.mrb[0].mxu0
        %v348 = vpop.f32.mrb[0].mxu0
        %v349 = vpop.f32.mrb[0].mxu0
        %350 = vdwg.mxu0
        %351 = vst [vmem:[#allocation2] sm:$0xff] %v305
        %352 = vst [vmem:[#allocation2 + $0x8] sm:$0xff] %v307
        %vm353 = vcmask 261120
        %354 = vst.msk [vmem:[#allocation2 + $0x10] sm:$0xff] %vm353, %v346
        %v355 = vld [vmem:[%s235] sm:$0xff]
        %v356 = vld [vmem:[%s235 + $0x8] sm:$0xf]
        %s357 = scalar_lea.vmem %s239, 4
        %v358 = vld [vmem:[%s357] sm:$0xf]
        %v361 = vunpack.c.l.b16 %v355
        %v362 = vunpack.c.h.b16 %v355
        %v363 = vunpack.c.l.b16 %v356
        %v364 = vpack.c.b16 %v361, %v361
        %v365 = vpack.c.b16 %v362, %v362
        %v366 = vpack.c.b16 %v363, %v363
        %367 = vrot.lane.b32.xlu0 %v364, 127
        %v368 = vpop.permute.xlu0 %367
        %369 = vrot.lane.b32.xlu0 %v365, 127
        %v370 = vpop.permute.xlu0 %369
        %371 = vrot.lane.b32.xlu0 %v366, 127
        %v372 = vpop.permute.xlu0 %371
        %vm373 = vcmask 1039360
        %v374 = vsel %vm373, %v368, %v370
        %v375 = vsel %vm373, %v370, %v372
        %v377 = vsel %vm256, %v358, 0
        %v380 = vsel %vm260, %v374, 0
        %v383 = vsel %vm260, %v375, 0
        %v386 = vsel %vm260, %v372, 0
        %388 = vmatprep.subr.bf16.mxu0 %v383
        %389 = vmatpush1.bf16.msra.mxu0 %v380
        %390 = vmatprep.subr.bf16.mxu0 0
        %391 = vmatpush1.bf16.msra.mxu0 0
        %392 = vmatprep.subr.bf16.mxu0 0
        %393 = vmatpush1.bf16.msra.mxu0 0
        %394 = vmatprep.subr.bf16.mxu0 0
        %395 = vmatpush1.bf16.msra.mxu0 0
        %396 = vmatprep.subr.bf16.mxu0 0
        %397 = vmatpush1.bf16.msra.mxu0 0
        %398 = vmatprep.subr.bf16.mxu0 0
        %399 = vmatpush1.bf16.msra.mxu0 0
        %400 = vmatprep.subr.bf16.mxu0 0
        %401 = vmatpush1.bf16.msra.mxu0 0
        %402 = vmatprep.subr.bf16.mxu0 0
        %403 = vmatpush1.bf16.msra.mxu0 0
        %404 = vmatprep.subr.bf16.mxu0 0
        %405 = vmatpush1.bf16.msra.mxu0 0
        %406 = vmatprep.subr.bf16.mxu0 0
        %407 = vmatpush1.bf16.msra.mxu0 0
        %408 = vmatprep.subr.bf16.mxu0 0
        %409 = vmatpush1.bf16.msra.mxu0 0
        %410 = vmatprep.subr.bf16.mxu0 0
        %411 = vmatpush1.bf16.msra.mxu0 0
        %412 = vmatprep.subr.bf16.mxu0 0
        %413 = vmatpush1.bf16.msra.mxu0 0
        %414 = vmatprep.subr.bf16.mxu0 0
        %415 = vmatpush1.bf16.msra.mxu0 0
        %416 = vmatprep.subr.bf16.mxu0 0
        %417 = vmatpush1.bf16.msra.mxu0 0
        %418 = vmatprep.subr.bf16.mxu0 0
        %419 = vmatpush1.bf16.msra.mxu0 0
        %420 = vmatprep.mubr.bf16.mxu0 0
        %421 = vmatmul.mubr.bf16.gmra.mrb[0].mxu0 %v377
        %v422 = vpop.f32.mrb[0].mxu0
        %v423 = vadd.f32 0.0, %v422
        %v424 = vpop.f32.mrb[0].mxu0
        %v425 = vadd.f32 0.0, %v424
        %v426 = vpop.f32.mrb[0].mxu0
        %v427 = vpop.f32.mrb[0].mxu0
        %428 = vdwg.mxu0
        %429 = vmatprep.subr.bf16.mxu0 0
        %430 = vmatpush1.bf16.msra.mxu0 %v386
        %431 = vmatprep.subr.bf16.mxu0 0
        %432 = vmatpush1.bf16.msra.mxu0 0
        %433 = vmatprep.subr.bf16.mxu0 0
        %434 = vmatpush1.bf16.msra.mxu0 0
        %435 = vmatprep.subr.bf16.mxu0 0
        %436 = vmatpush1.bf16.msra.mxu0 0
        %437 = vmatprep.subr.bf16.mxu0 0
        %438 = vmatpush1.bf16.msra.mxu0 0
        %439 = vmatprep.subr.bf16.mxu0 0
        %440 = vmatpush1.bf16.msra.mxu0 0
        %441 = vmatprep.subr.bf16.mxu0 0
        %442 = vmatpush1.bf16.msra.mxu0 0
        %443 = vmatprep.subr.bf16.mxu0 0
        %444 = vmatpush1.bf16.msra.mxu0 0
        %445 = vmatprep.subr.bf16.mxu0 0
        %446 = vmatpush1.bf16.msra.mxu0 0
        %447 = vmatprep.subr.bf16.mxu0 0
        %448 = vmatpush1.bf16.msra.mxu0 0
        %449 = vmatprep.subr.bf16.mxu0 0
        %450 = vmatpush1.bf16.msra.mxu0 0
        %451 = vmatprep.subr.bf16.mxu0 0
        %452 = vmatpush1.bf16.msra.mxu0 0
        %453 = vmatprep.subr.bf16.mxu0 0
        %454 = vmatpush1.bf16.msra.mxu0 0
        %455 = vmatprep.subr.bf16.mxu0 0
        %456 = vmatpush1.bf16.msra.mxu0 0
        %457 = vmatprep.subr.bf16.mxu0 0
        %458 = vmatpush1.bf16.msra.mxu0 0
        %459 = vmatprep.subr.bf16.mxu0 0
        %460 = vmatpush1.bf16.msra.mxu0 0
        %461 = vmatprep.mubr.bf16.mxu0 0
        %462 = vmatmul.mubr.bf16.gmra.mrb[0].mxu0 %v377
        %v463 = vpop.f32.mrb[0].mxu0
        %v464 = vadd.f32 0.0, %v463
        %v465 = vpop.f32.mrb[0].mxu0
        %v466 = vpop.f32.mrb[0].mxu0
        %v467 = vpop.f32.mrb[0].mxu0
        %468 = vdwg.mxu0
        %v469 = vld [vmem:[#allocation2] sm:$0xff]
        %v470 = vld [vmem:[#allocation2 + $0x8] sm:$0xff]
        %v471 = vld [vmem:[#allocation2 + $0x10] sm:$0xff]
        %v472 = vadd.f32 %v469, %v423
        %v473 = vadd.f32 %v470, %v425
        %v474 = vadd.f32 %v471, %v464
        %475 = vst [vmem:[#allocation2] sm:$0xff] %v472
        %476 = vst [vmem:[#allocation2 + $0x8] sm:$0xff] %v473
        %477 = vst.msk [vmem:[#allocation2 + $0x10] sm:$0xff] %vm353, %v474
        %s478 = scalar_lea.vmem %s239, 16
        %v479 = vld [vmem:[%s478] sm:$0xf]
        %v481 = vsel %vm256, %v479, 0
        %483 = vmatprep.subr.bf16.mxu0 %v383
        %484 = vmatpush1.bf16.msra.mxu0 %v380
        %485 = vmatprep.subr.bf16.mxu0 0
        %486 = vmatpush1.bf16.msra.mxu0 0
        %487 = vmatprep.subr.bf16.mxu0 0
        %488 = vmatpush1.bf16.msra.mxu0 0
        %489 = vmatprep.subr.bf16.mxu0 0
        %490 = vmatpush1.bf16.msra.mxu0 0
        %491 = vmatprep.subr.bf16.mxu0 0
        %492 = vmatpush1.bf16.msra.mxu0 0
        %493 = vmatprep.subr.bf16.mxu0 0
        %494 = vmatpush1.bf16.msra.mxu0 0
        %495 = vmatprep.subr.bf16.mxu0 0
        %496 = vmatpush1.bf16.msra.mxu0 0
        %497 = vmatprep.subr.bf16.mxu0 0
        %498 = vmatpush1.bf16.msra.mxu0 0
        %499 = vmatprep.subr.bf16.mxu0 0
        %500 = vmatpush1.bf16.msra.mxu0 0
        %501 = vmatprep.subr.bf16.mxu0 0
        %502 = vmatpush1.bf16.msra.mxu0 0
        %503 = vmatprep.subr.bf16.mxu0 0
        %504 = vmatpush1.bf16.msra.mxu0 0
        %505 = vmatprep.subr.bf16.mxu0 0
        %506 = vmatpush1.bf16.msra.mxu0 0
        %507 = vmatprep.subr.bf16.mxu0 0
        %508 = vmatpush1.bf16.msra.mxu0 0
        %509 = vmatprep.subr.bf16.mxu0 0
        %510 = vmatpush1.bf16.msra.mxu0 0
        %511 = vmatprep.subr.bf16.mxu0 0
        %512 = vmatpush1.bf16.msra.mxu0 0
        %513 = vmatprep.subr.bf16.mxu0 0
        %514 = vmatpush1.bf16.msra.mxu0 0
        %515 = vmatprep.mubr.bf16.mxu0 0
        %516 = vmatmul.mubr.bf16.gmra.mrb[0].mxu0 %v481
        %v517 = vpop.f32.mrb[0].mxu0
        %v518 = vadd.f32 0.0, %v517
        %v519 = vpop.f32.mrb[0].mxu0
        %v520 = vadd.f32 0.0, %v519
        %v521 = vpop.f32.mrb[0].mxu0
        %v522 = vpop.f32.mrb[0].mxu0
        %523 = vdwg.mxu0
        %524 = vmatprep.subr.bf16.mxu0 0
        %525 = vmatpush1.bf16.msra.mxu0 %v386
        %526 = vmatprep.subr.bf16.mxu0 0
        %527 = vmatpush1.bf16.msra.mxu0 0
        %528 = vmatprep.subr.bf16.mxu0 0
        %529 = vmatpush1.bf16.msra.mxu0 0
        %530 = vmatprep.subr.bf16.mxu0 0
        %531 = vmatpush1.bf16.msra.mxu0 0
        %532 = vmatprep.subr.bf16.mxu0 0
        %533 = vmatpush1.bf16.msra.mxu0 0
        %534 = vmatprep.subr.bf16.mxu0 0
        %535 = vmatpush1.bf16.msra.mxu0 0
        %536 = vmatprep.subr.bf16.mxu0 0
        %537 = vmatpush1.bf16.msra.mxu0 0
        %538 = vmatprep.subr.bf16.mxu0 0
        %539 = vmatpush1.bf16.msra.mxu0 0
        %540 = vmatprep.subr.bf16.mxu0 0
        %541 = vmatpush1.bf16.msra.mxu0 0
        %542 = vmatprep.subr.bf16.mxu0 0
        %543 = vmatpush1.bf16.msra.mxu0 0
        %544 = vmatprep.subr.bf16.mxu0 0
        %545 = vmatpush1.bf16.msra.mxu0 0
        %546 = vmatprep.subr.bf16.mxu0 0
        %547 = vmatpush1.bf16.msra.mxu0 0
        %548 = vmatprep.subr.bf16.mxu0 0
        %549 = vmatpush1.bf16.msra.mxu0 0
        %550 = vmatprep.subr.bf16.mxu0 0
        %551 = vmatpush1.bf16.msra.mxu0 0
        %552 = vmatprep.subr.bf16.mxu0 0
        %553 = vmatpush1.bf16.msra.mxu0 0
        %554 = vmatprep.subr.bf16.mxu0 0
        %555 = vmatpush1.bf16.msra.mxu0 0
        %556 = vmatprep.mubr.bf16.mxu0 0
        %557 = vmatmul.mubr.bf16.gmra.mrb[0].mxu0 %v481
        %v558 = vpop.f32.mrb[0].mxu0
        %v559 = vadd.f32 0.0, %v558
        %v560 = vpop.f32.mrb[0].mxu0
        %v561 = vpop.f32.mrb[0].mxu0
        %v562 = vpop.f32.mrb[0].mxu0
        %563 = vdwg.mxu0
        %s564 = scalar_lea.vmem [#allocation2], 24
        %565 = vst [vmem:[%s564] sm:$0xff] %v518
        %566 = vst [vmem:[%s564 + $0x8] sm:$0xff] %v520
        %567 = vst.msk [vmem:[%s564 + $0x10] sm:$0xff] %vm353, %v559
        %v568 = vld [vmem:[%s235] sm:$0xff]
        %v569 = vld [vmem:[%s235 + $0x8] sm:$0xf]
        %s570 = scalar_lea.vmem %s239, 20
        %v571 = vld [vmem:[%s570] sm:$0xf]
        %v574 = vunpack.c.l.b16 %v568
        %v575 = vunpack.c.h.b16 %v568
        %v576 = vunpack.c.l.b16 %v569
        %v577 = vpack.c.b16 %v574, %v574
        %v578 = vpack.c.b16 %v575, %v575
        %v579 = vpack.c.b16 %v576, %v576
        %580 = vrot.lane.b32.xlu0 %v577, 126
        %v581 = vpop.permute.xlu0 %580
        %582 = vrot.lane.b32.xlu0 %v578, 126
        %v583 = vpop.permute.xlu0 %582
        %584 = vrot.lane.b32.xlu0 %v579, 126
        %v585 = vpop.permute.xlu0 %584
        %vm586 = vcmask 1031168
        %v587 = vsel %vm586, %v581, %v583
        %v588 = vsel %vm586, %v583, %v585
        %v590 = vsel %vm256, %v571, 0
        %v593 = vsel %vm260, %v587, 0
        %v596 = vsel %vm260, %v588, 0
        %v599 = vsel %vm260, %v585, 0
        %601 = vmatprep.subr.bf16.mxu0 %v596
        %602 = vmatpush1.bf16.msra.mxu0 %v593
        %603 = vmatprep.subr.bf16.mxu0 0
        %604 = vmatpush1.bf16.msra.mxu0 0
        %605 = vmatprep.subr.bf16.mxu0 0
        %606 = vmatpush1.bf16.msra.mxu0 0
        %607 = vmatprep.subr.bf16.mxu0 0
        %608 = vmatpush1.bf16.msra.mxu0 0
        %609 = vmatprep.subr.bf16.mxu0 0
        %610 = vmatpush1.bf16.msra.mxu0 0
        %611 = vmatprep.subr.bf16.mxu0 0
        %612 = vmatpush1.bf16.msra.mxu0 0
        %613 = vmatprep.subr.bf16.mxu0 0
        %614 = vmatpush1.bf16.msra.mxu0 0
        %615 = vmatprep.subr.bf16.mxu0 0
        %616 = vmatpush1.bf16.msra.mxu0 0
        %617 = vmatprep.subr.bf16.mxu0 0
        %618 = vmatpush1.bf16.msra.mxu0 0
        %619 = vmatprep.subr.bf16.mxu0 0
        %620 = vmatpush1.bf16.msra.mxu0 0
        %621 = vmatprep.subr.bf16.mxu0 0
        %622 = vmatpush1.bf16.msra.mxu0 0
        %623 = vmatprep.subr.bf16.mxu0 0
        %624 = vmatpush1.bf16.msra.mxu0 0
        %625 = vmatprep.subr.bf16.mxu0 0
        %626 = vmatpush1.bf16.msra.mxu0 0
        %627 = vmatprep.subr.bf16.mxu0 0
        %628 = vmatpush1.bf16.msra.mxu0 0
        %629 = vmatprep.subr.bf16.mxu0 0
        %630 = vmatpush1.bf16.msra.mxu0 0
        %631 = vmatprep.subr.bf16.mxu0 0
        %632 = vmatpush1.bf16.msra.mxu0 0
        %633 = vmatprep.mubr.bf16.mxu0 0
        %634 = vmatmul.mubr.bf16.gmra.mrb[0].mxu0 %v590
        %v635 = vpop.f32.mrb[0].mxu0
        %v636 = vadd.f32 0.0, %v635
        %v637 = vpop.f32.mrb[0].mxu0
        %v638 = vadd.f32 0.0, %v637
        %v639 = vpop.f32.mrb[0].mxu0
        %v640 = vpop.f32.mrb[0].mxu0
        %641 = vdwg.mxu0
        %642 = vmatprep.subr.bf16.mxu0 0
        %643 = vmatpush1.bf16.msra.mxu0 %v599
        %644 = vmatprep.subr.bf16.mxu0 0
        %645 = vmatpush1.bf16.msra.mxu0 0
        %646 = vmatprep.subr.bf16.mxu0 0
        %647 = vmatpush1.bf16.msra.mxu0 0
        %648 = vmatprep.subr.bf16.mxu0 0
        %649 = vmatpush1.bf16.msra.mxu0 0
        %650 = vmatprep.subr.bf16.mxu0 0
        %651 = vmatpush1.bf16.msra.mxu0 0
        %652 = vmatprep.subr.bf16.mxu0 0
        %653 = vmatpush1.bf16.msra.mxu0 0
        %654 = vmatprep.subr.bf16.mxu0 0
        %655 = vmatpush1.bf16.msra.mxu0 0
        %656 = vmatprep.subr.bf16.mxu0 0
        %657 = vmatpush1.bf16.msra.mxu0 0
        %658 = vmatprep.subr.bf16.mxu0 0
        %659 = vmatpush1.bf16.msra.mxu0 0
        %660 = vmatprep.subr.bf16.mxu0 0
        %661 = vmatpush1.bf16.msra.mxu0 0
        %662 = vmatprep.subr.bf16.mxu0 0
        %663 = vmatpush1.bf16.msra.mxu0 0
        %664 = vmatprep.subr.bf16.mxu0 0
        %665 = vmatpush1.bf16.msra.mxu0 0
        %666 = vmatprep.subr.bf16.mxu0 0
        %667 = vmatpush1.bf16.msra.mxu0 0
        %668 = vmatprep.subr.bf16.mxu0 0
        %669 = vmatpush1.bf16.msra.mxu0 0
        %670 = vmatprep.subr.bf16.mxu0 0
        %671 = vmatpush1.bf16.msra.mxu0 0
        %672 = vmatprep.subr.bf16.mxu0 0
        %673 = vmatpush1.bf16.msra.mxu0 0
        %674 = vmatprep.mubr.bf16.mxu0 0
        %675 = vmatmul.mubr.bf16.gmra.mrb[0].mxu0 %v590
        %v676 = vpop.f32.mrb[0].mxu0
        %v677 = vadd.f32 0.0, %v676
        %v678 = vpop.f32.mrb[0].mxu0
        %v679 = vpop.f32.mrb[0].mxu0
        %v680 = vpop.f32.mrb[0].mxu0
        %681 = vdwg.mxu0
        %v682 = vld [vmem:[%s564] sm:$0xff]
        %v683 = vld [vmem:[%s564 + $0x8] sm:$0xff]
        %v684 = vld [vmem:[%s564 + $0x10] sm:$0xff]
        %v685 = vadd.f32 %v682, %v636
        %v686 = vadd.f32 %v683, %v638
        %v687 = vadd.f32 %v684, %v677
        %688 = vst [vmem:[%s564] sm:$0xff] %v685
        %689 = vst [vmem:[%s564 + $0x8] sm:$0xff] %v686
        %690 = vst.msk [vmem:[%s564 + $0x10] sm:$0xff] %vm353, %v687
        %v691 = vld [vmem:[%s235] sm:$0xff]
        %v692 = vld [vmem:[%s235 + $0x8] sm:$0xf]
        %s693 = scalar_lea.vmem %s239, 8
        %v694 = vld [vmem:[%s693] sm:$0xf]
        %v697 = vunpack.c.l.b16 %v691
        %v698 = vunpack.c.h.b16 %v691
        %v699 = vunpack.c.l.b16 %v692
        %v700 = vpack.c.b16 %v697, %v697
        %v701 = vpack.c.b16 %v698, %v698
        %v702 = vpack.c.b16 %v699, %v699
        %703 = vrot.lane.b32.xlu0 %v700, 110
        %v704 = vpop.permute.xlu0 %703
        %705 = vrot.lane.b32.xlu0 %v701, 110
        %v706 = vpop.permute.xlu0 %705
        %707 = vrot.lane.b32.xlu0 %v702, 110
        %v708 = vpop.permute.xlu0 %707
        %vm709 = vcmask 900096
        %v710 = vsel %vm709, %v704, %v706
        %v711 = vsel %vm709, %v706, %v708
        %v713 = vsel %vm256, %v694, 0
        %v716 = vsel %vm260, %v710, 0
        %v719 = vsel %vm260, %v711, 0
        %v722 = vsel %vm260, %v708, 0
        %724 = vmatprep.subr.bf16.mxu0 %v719
        %725 = vmatpush1.bf16.msra.mxu0 %v716
        %726 = vmatprep.subr.bf16.mxu0 0
        %727 = vmatpush1.bf16.msra.mxu0 0
        %728 = vmatprep.subr.bf16.mxu0 0
        %729 = vmatpush1.bf16.msra.mxu0 0
        %730 = vmatprep.subr.bf16.mxu0 0
        %731 = vmatpush1.bf16.msra.mxu0 0
        %732 = vmatprep.subr.bf16.mxu0 0
        %733 = vmatpush1.bf16.msra.mxu0 0
        %734 = vmatprep.subr.bf16.mxu0 0
        %735 = vmatpush1.bf16.msra.mxu0 0
        %736 = vmatprep.subr.bf16.mxu0 0
        %737 = vmatpush1.bf16.msra.mxu0 0
        %738 = vmatprep.subr.bf16.mxu0 0
        %739 = vmatpush1.bf16.msra.mxu0 0
        %740 = vmatprep.subr.bf16.mxu0 0
        %741 = vmatpush1.bf16.msra.mxu0 0
        %742 = vmatprep.subr.bf16.mxu0 0
        %743 = vmatpush1.bf16.msra.mxu0 0
        %744 = vmatprep.subr.bf16.mxu0 0
        %745 = vmatpush1.bf16.msra.mxu0 0
        %746 = vmatprep.subr.bf16.mxu0 0
        %747 = vmatpush1.bf16.msra.mxu0 0
        %748 = vmatprep.subr.bf16.mxu0 0
        %749 = vmatpush1.bf16.msra.mxu0 0
        %750 = vmatprep.subr.bf16.mxu0 0
        %751 = vmatpush1.bf16.msra.mxu0 0
        %752 = vmatprep.subr.bf16.mxu0 0
        %753 = vmatpush1.bf16.msra.mxu0 0
        %754 = vmatprep.subr.bf16.mxu0 0
        %755 = vmatpush1.bf16.msra.mxu0 0
        %756 = vmatprep.mubr.bf16.mxu0 0
        %757 = vmatmul.mubr.bf16.gmra.mrb[0].mxu0 %v713
        %v758 = vpop.f32.mrb[0].mxu0
        %v759 = vadd.f32 0.0, %v758
        %v760 = vpop.f32.mrb[0].mxu0
        %v761 = vadd.f32 0.0, %v760
        %v762 = vpop.f32.mrb[0].mxu0
        %v763 = vpop.f32.mrb[0].mxu0
        %764 = vdwg.mxu0
        %765 = vmatprep.subr.bf16.mxu0 0
        %766 = vmatpush1.bf16.msra.mxu0 %v722
        %767 = vmatprep.subr.bf16.mxu0 0
        %768 = vmatpush1.bf16.msra.mxu0 0
        %769 = vmatprep.subr.bf16.mxu0 0
        %770 = vmatpush1.bf16.msra.mxu0 0
        %771 = vmatprep.subr.bf16.mxu0 0
        %772 = vmatpush1.bf16.msra.mxu0 0
        %773 = vmatprep.subr.bf16.mxu0 0
        %774 = vmatpush1.bf16.msra.mxu0 0
        %775 = vmatprep.subr.bf16.mxu0 0
        %776 = vmatpush1.bf16.msra.mxu0 0
        %777 = vmatprep.subr.bf16.mxu0 0
        %778 = vmatpush1.bf16.msra.mxu0 0
        %779 = vmatprep.subr.bf16.mxu0 0
        %780 = vmatpush1.bf16.msra.mxu0 0
        %781 = vmatprep.subr.bf16.mxu0 0
        %782 = vmatpush1.bf16.msra.mxu0 0
        %783 = vmatprep.subr.bf16.mxu0 0
        %784 = vmatpush1.bf16.msra.mxu0 0
        %785 = vmatprep.subr.bf16.mxu0 0
        %786 = vmatpush1.bf16.msra.mxu0 0
        %787 = vmatprep.subr.bf16.mxu0 0
        %788 = vmatpush1.bf16.msra.mxu0 0
        %789 = vmatprep.subr.bf16.mxu0 0
        %790 = vmatpush1.bf16.msra.mxu0 0
        %791 = vmatprep.subr.bf16.mxu0 0
        %792 = vmatpush1.bf16.msra.mxu0 0
        %793 = vmatprep.subr.bf16.mxu0 0
        %794 = vmatpush1.bf16.msra.mxu0 0
        %795 = vmatprep.subr.bf16.mxu0 0
        %796 = vmatpush1.bf16.msra.mxu0 0
        %797 = vmatprep.mubr.bf16.mxu0 0
        %798 = vmatmul.mubr.bf16.gmra.mrb[0].mxu0 %v713
        %v799 = vpop.f32.mrb[0].mxu0
        %v800 = vadd.f32 0.0, %v799
        %v801 = vpop.f32.mrb[0].mxu0
        %v802 = vpop.f32.mrb[0].mxu0
        %v803 = vpop.f32.mrb[0].mxu0
        %804 = vdwg.mxu0
        %v805 = vld [vmem:[#allocation2] sm:$0xff]
        %v806 = vld [vmem:[#allocation2 + $0x8] sm:$0xff]
        %v807 = vld [vmem:[#allocation2 + $0x10] sm:$0xff]
        %v808 = vadd.f32 %v805, %v759
        %v809 = vadd.f32 %v806, %v761
        %v810 = vadd.f32 %v807, %v800
        %811 = vst [vmem:[#allocation2] sm:$0xff] %v808
        %812 = vst [vmem:[#allocation2 + $0x8] sm:$0xff] %v809
        %813 = vst.msk [vmem:[#allocation2 + $0x10] sm:$0xff] %vm353, %v810
        %s814 = scalar_lea.vmem %s239, 32
        %v815 = vld [vmem:[%s814] sm:$0xf]
        %v817 = vsel %vm256, %v815, 0
        %819 = vmatprep.subr.bf16.mxu0 %v719
        %820 = vmatpush1.bf16.msra.mxu0 %v716
        %821 = vmatprep.subr.bf16.mxu0 0
        %822 = vmatpush1.bf16.msra.mxu0 0
        %823 = vmatprep.subr.bf16.mxu0 0
        %824 = vmatpush1.bf16.msra.mxu0 0
        %825 = vmatprep.subr.bf16.mxu0 0
        %826 = vmatpush1.bf16.msra.mxu0 0
        %827 = vmatprep.subr.bf16.mxu0 0
        %828 = vmatpush1.bf16.msra.mxu0 0
        %829 = vmatprep.subr.bf16.mxu0 0
        %830 = vmatpush1.bf16.msra.mxu0 0
        %831 = vmatprep.subr.bf16.mxu0 0
        %832 = vmatpush1.bf16.msra.mxu0 0
        %833 = vmatprep.subr.bf16.mxu0 0
        %834 = vmatpush1.bf16.msra.mxu0 0
        %835 = vmatprep.subr.bf16.mxu0 0
        %836 = vmatpush1.bf16.msra.mxu0 0
        %837 = vmatprep.subr.bf16.mxu0 0
        %838 = vmatpush1.bf16.msra.mxu0 0
        %839 = vmatprep.subr.bf16.mxu0 0
        %840 = vmatpush1.bf16.msra.mxu0 0
        %841 = vmatprep.subr.bf16.mxu0 0
        %842 = vmatpush1.bf16.msra.mxu0 0
        %843 = vmatprep.subr.bf16.mxu0 0
        %844 = vmatpush1.bf16.msra.mxu0 0
        %845 = vmatprep.subr.bf16.mxu0 0
        %846 = vmatpush1.bf16.msra.mxu0 0
        %847 = vmatprep.subr.bf16.mxu0 0
        %848 = vmatpush1.bf16.msra.mxu0 0
        %849 = vmatprep.subr.bf16.mxu0 0
        %850 = vmatpush1.bf16.msra.mxu0 0
        %851 = vmatprep.mubr.bf16.mxu0 0
        %852 = vmatmul.mubr.bf16.gmra.mrb[0].mxu0 %v817
        %v853 = vpop.f32.mrb[0].mxu0
        %v854 = vadd.f32 0.0, %v853
        %v855 = vpop.f32.mrb[0].mxu0
        %v856 = vadd.f32 0.0, %v855
        %v857 = vpop.f32.mrb[0].mxu0
        %v858 = vpop.f32.mrb[0].mxu0
        %859 = vdwg.mxu0
        %860 = vmatprep.subr.bf16.mxu0 0
        %861 = vmatpush1.bf16.msra.mxu0 %v722
        %862 = vmatprep.subr.bf16.mxu0 0
        %863 = vmatpush1.bf16.msra.mxu0 0
        %864 = vmatprep.subr.bf16.mxu0 0
        %865 = vmatpush1.bf16.msra.mxu0 0
        %866 = vmatprep.subr.bf16.mxu0 0
        %867 = vmatpush1.bf16.msra.mxu0 0
        %868 = vmatprep.subr.bf16.mxu0 0
        %869 = vmatpush1.bf16.msra.mxu0 0
        %870 = vmatprep.subr.bf16.mxu0 0
        %871 = vmatpush1.bf16.msra.mxu0 0
        %872 = vmatprep.subr.bf16.mxu0 0
        %873 = vmatpush1.bf16.msra.mxu0 0
        %874 = vmatprep.subr.bf16.mxu0 0
        %875 = vmatpush1.bf16.msra.mxu0 0
        %876 = vmatprep.subr.bf16.mxu0 0
        %877 = vmatpush1.bf16.msra.mxu0 0
        %878 = vmatprep.subr.bf16.mxu0 0
        %879 = vmatpush1.bf16.msra.mxu0 0
        %880 = vmatprep.subr.bf16.mxu0 0
        %881 = vmatpush1.bf16.msra.mxu0 0
        %882 = vmatprep.subr.bf16.mxu0 0
        %883 = vmatpush1.bf16.msra.mxu0 0
        %884 = vmatprep.subr.bf16.mxu0 0
        %885 = vmatpush1.bf16.msra.mxu0 0
        %886 = vmatprep.subr.bf16.mxu0 0
        %887 = vmatpush1.bf16.msra.mxu0 0
        %888 = vmatprep.subr.bf16.mxu0 0
        %889 = vmatpush1.bf16.msra.mxu0 0
        %890 = vmatprep.subr.bf16.mxu0 0
        %891 = vmatpush1.bf16.msra.mxu0 0
        %892 = vmatprep.mubr.bf16.mxu0 0
        %893 = vmatmul.mubr.bf16.gmra.mrb[0].mxu0 %v817
        %v894 = vpop.f32.mrb[0].mxu0
        %v895 = vadd.f32 0.0, %v894
        %v896 = vpop.f32.mrb[0].mxu0
        %v897 = vpop.f32.mrb[0].mxu0
        %v898 = vpop.f32.mrb[0].mxu0
        %899 = vdwg.mxu0
        %s900 = scalar_lea.vmem [#allocation2], 48
        %901 = vst [vmem:[%s900] sm:$0xff] %v854
        %902 = vst [vmem:[%s900 + $0x8] sm:$0xff] %v856
        %903 = vst.msk [vmem:[%s900 + $0x10] sm:$0xff] %vm353, %v895
        %v904 = vld [vmem:[%s235] sm:$0xff]
        %v905 = vld [vmem:[%s235 + $0x8] sm:$0xf]
        %s906 = scalar_lea.vmem %s239, 12
        %v907 = vld [vmem:[%s906] sm:$0xf]
        %v910 = vunpack.c.l.b16 %v904
        %v911 = vunpack.c.h.b16 %v904
        %v912 = vunpack.c.l.b16 %v905
        %v913 = vpack.c.b16 %v910, %v910
        %v914 = vpack.c.b16 %v911, %v911
        %v915 = vpack.c.b16 %v912, %v912
        %916 = vrot.lane.b32.xlu0 %v913, 109
        %v917 = vpop.permute.xlu0 %916
        %918 = vrot.lane.b32.xlu0 %v914, 109
        %v919 = vpop.permute.xlu0 %918
        %920 = vrot.lane.b32.xlu0 %v915, 109
        %v921 = vpop.permute.xlu0 %920
        %vm922 = vcmask 891904
        %v923 = vsel %vm922, %v917, %v919
        %v924 = vsel %vm922, %v919, %v921
        %v926 = vsel %vm256, %v907, 0
        %v929 = vsel %vm260, %v923, 0
        %v932 = vsel %vm260, %v924, 0
        %v935 = vsel %vm260, %v921, 0
        %937 = vmatprep.subr.bf16.mxu0 %v932
        %938 = vmatpush1.bf16.msra.mxu0 %v929
        %939 = vmatprep.subr.bf16.mxu0 0
        %940 = vmatpush1.bf16.msra.mxu0 0
        %941 = vmatprep.subr.bf16.mxu0 0
        %942 = vmatpush1.bf16.msra.mxu0 0
        %943 = vmatprep.subr.bf16.mxu0 0
        %944 = vmatpush1.bf16.msra.mxu0 0
        %945 = vmatprep.subr.bf16.mxu0 0
        %946 = vmatpush1.bf16.msra.mxu0 0
        %947 = vmatprep.subr.bf16.mxu0 0
        %948 = vmatpush1.bf16.msra.mxu0 0
        %949 = vmatprep.subr.bf16.mxu0 0
        %950 = vmatpush1.bf16.msra.mxu0 0
        %951 = vmatprep.subr.bf16.mxu0 0
        %952 = vmatpush1.bf16.msra.mxu0 0
        %953 = vmatprep.subr.bf16.mxu0 0
        %954 = vmatpush1.bf16.msra.mxu0 0
        %955 = vmatprep.subr.bf16.mxu0 0
        %956 = vmatpush1.bf16.msra.mxu0 0
        %957 = vmatprep.subr.bf16.mxu0 0
        %958 = vmatpush1.bf16.msra.mxu0 0
        %959 = vmatprep.subr.bf16.mxu0 0
        %960 = vmatpush1.bf16.msra.mxu0 0
        %961 = vmatprep.subr.bf16.mxu0 0
        %962 = vmatpush1.bf16.msra.mxu0 0
        %963 = vmatprep.subr.bf16.mxu0 0
        %964 = vmatpush1.bf16.msra.mxu0 0
        %965 = vmatprep.subr.bf16.mxu0 0
        %966 = vmatpush1.bf16.msra.mxu0 0
        %967 = vmatprep.subr.bf16.mxu0 0
        %968 = vmatpush1.bf16.msra.mxu0 0
        %969 = vmatprep.mubr.bf16.mxu0 0
        %970 = vmatmul.mubr.bf16.gmra.mrb[0].mxu0 %v926
        %v971 = vpop.f32.mrb[0].mxu0
        %v972 = vadd.f32 0.0, %v971
        %v973 = vpop.f32.mrb[0].mxu0
        %v974 = vadd.f32 0.0, %v973
        %v975 = vpop.f32.mrb[0].mxu0
        %v976 = vpop.f32.mrb[0].mxu0
        %977 = vdwg.mxu0
        %978 = vmatprep.subr.bf16.mxu0 0
        %979 = vmatpush1.bf16.msra.mxu0 %v935
        %980 = vmatprep.subr.bf16.mxu0 0
        %981 = vmatpush1.bf16.msra.mxu0 0
        %982 = vmatprep.subr.bf16.mxu0 0
        %983 = vmatpush1.bf16.msra.mxu0 0
        %984 = vmatprep.subr.bf16.mxu0 0
        %985 = vmatpush1.bf16.msra.mxu0 0
        %986 = vmatprep.subr.bf16.mxu0 0
        %987 = vmatpush1.bf16.msra.mxu0 0
        %988 = vmatprep.subr.bf16.mxu0 0
        %989 = vmatpush1.bf16.msra.mxu0 0
        %990 = vmatprep.subr.bf16.mxu0 0
        %991 = vmatpush1.bf16.msra.mxu0 0
        %992 = vmatprep.subr.bf16.mxu0 0
        %993 = vmatpush1.bf16.msra.mxu0 0
        %994 = vmatprep.subr.bf16.mxu0 0
        %995 = vmatpush1.bf16.msra.mxu0 0
        %996 = vmatprep.subr.bf16.mxu0 0
        %997 = vmatpush1.bf16.msra.mxu0 0
        %998 = vmatprep.subr.bf16.mxu0 0
        %999 = vmatpush1.bf16.msra.mxu0 0
        %1000 = vmatprep.subr.bf16.mxu0 0
        %1001 = vmatpush1.bf16.msra.mxu0 0
        %1002 = vmatprep.subr.bf16.mxu0 0
        %1003 = vmatpush1.bf16.msra.mxu0 0
        %1004 = vmatprep.subr.bf16.mxu0 0
        %1005 = vmatpush1.bf16.msra.mxu0 0
        %1006 = vmatprep.subr.bf16.mxu0 0
        %1007 = vmatpush1.bf16.msra.mxu0 0
        %1008 = vmatprep.subr.bf16.mxu0 0
        %1009 = vmatpush1.bf16.msra.mxu0 0
        %1010 = vmatprep.mubr.bf16.mxu0 0
        %1011 = vmatmul.mubr.bf16.gmra.mrb[0].mxu0 %v926
        %v1012 = vpop.f32.mrb[0].mxu0
        %v1013 = vadd.f32 0.0, %v1012
        %v1014 = vpop.f32.mrb[0].mxu0
        %v1015 = vpop.f32.mrb[0].mxu0
        %v1016 = vpop.f32.mrb[0].mxu0
        %1017 = vdwg.mxu0
        %v1018 = vld [vmem:[#allocation2] sm:$0xff]
        %v1019 = vld [vmem:[#allocation2 + $0x8] sm:$0xff]
        %v1020 = vld [vmem:[#allocation2 + $0x10] sm:$0xff]
        %v1021 = vadd.f32 %v1018, %v972
        %v1022 = vadd.f32 %v1019, %v974
        %v1023 = vadd.f32 %v1020, %v1013
        %1024 = vst [vmem:[#allocation2] sm:$0xff] %v1021
        %1025 = vst [vmem:[#allocation2 + $0x8] sm:$0xff] %v1022
        %1026 = vst.msk [vmem:[#allocation2 + $0x10] sm:$0xff] %vm353, %v1023
        %s1027 = scalar_lea.vmem %s239, 24
        %v1028 = vld [vmem:[%s1027] sm:$0xf]
        %v1030 = vsel %vm256, %v1028, 0
        %1032 = vmatprep.subr.bf16.mxu0 %v932
        %1033 = vmatpush1.bf16.msra.mxu0 %v929
        %1034 = vmatprep.subr.bf16.mxu0 0
        %1035 = vmatpush1.bf16.msra.mxu0 0
        %1036 = vmatprep.subr.bf16.mxu0 0
        %1037 = vmatpush1.bf16.msra.mxu0 0
        %1038 = vmatprep.subr.bf16.mxu0 0
        %1039 = vmatpush1.bf16.msra.mxu0 0
        %1040 = vmatprep.subr.bf16.mxu0 0
        %1041 = vmatpush1.bf16.msra.mxu0 0
        %1042 = vmatprep.subr.bf16.mxu0 0
        %1043 = vmatpush1.bf16.msra.mxu0 0
        %1044 = vmatprep.subr.bf16.mxu0 0
        %1045 = vmatpush1.bf16.msra.mxu0 0
        %1046 = vmatprep.subr.bf16.mxu0 0
        %1047 = vmatpush1.bf16.msra.mxu0 0
        %1048 = vmatprep.subr.bf16.mxu0 0
        %1049 = vmatpush1.bf16.msra.mxu0 0
        %1050 = vmatprep.subr.bf16.mxu0 0
        %1051 = vmatpush1.bf16.msra.mxu0 0
        %1052 = vmatprep.subr.bf16.mxu0 0
        %1053 = vmatpush1.bf16.msra.mxu0 0
        %1054 = vmatprep.subr.bf16.mxu0 0
        %1055 = vmatpush1.bf16.msra.mxu0 0
        %1056 = vmatprep.subr.bf16.mxu0 0
        %1057 = vmatpush1.bf16.msra.mxu0 0
        %1058 = vmatprep.subr.bf16.mxu0 0
        %1059 = vmatpush1.bf16.msra.mxu0 0
        %1060 = vmatprep.subr.bf16.mxu0 0
        %1061 = vmatpush1.bf16.msra.mxu0 0
        %1062 = vmatprep.subr.bf16.mxu0 0
        %1063 = vmatpush1.bf16.msra.mxu0 0
        %1064 = vmatprep.mubr.bf16.mxu0 0
        %1065 = vmatmul.mubr.bf16.gmra.mrb[0].mxu0 %v1030
        %v1066 = vpop.f32.mrb[0].mxu0
        %v1067 = vadd.f32 0.0, %v1066
        %v1068 = vpop.f32.mrb[0].mxu0
        %v1069 = vadd.f32 0.0, %v1068
        %v1070 = vpop.f32.mrb[0].mxu0
        %v1071 = vpop.f32.mrb[0].mxu0
        %1072 = vdwg.mxu0
        %1073 = vmatprep.subr.bf16.mxu0 0
        %1074 = vmatpush1.bf16.msra.mxu0 %v935
        %1075 = vmatprep.subr.bf16.mxu0 0
        %1076 = vmatpush1.bf16.msra.mxu0 0
        %1077 = vmatprep.subr.bf16.mxu0 0
        %1078 = vmatpush1.bf16.msra.mxu0 0
        %1079 = vmatprep.subr.bf16.mxu0 0
        %1080 = vmatpush1.bf16.msra.mxu0 0
        %1081 = vmatprep.subr.bf16.mxu0 0
        %1082 = vmatpush1.bf16.msra.mxu0 0
        %1083 = vmatprep.subr.bf16.mxu0 0
        %1084 = vmatpush1.bf16.msra.mxu0 0
        %1085 = vmatprep.subr.bf16.mxu0 0
        %1086 = vmatpush1.bf16.msra.mxu0 0
        %1087 = vmatprep.subr.bf16.mxu0 0
        %1088 = vmatpush1.bf16.msra.mxu0 0
        %1089 = vmatprep.subr.bf16.mxu0 0
        %1090 = vmatpush1.bf16.msra.mxu0 0
        %1091 = vmatprep.subr.bf16.mxu0 0
        %1092 = vmatpush1.bf16.msra.mxu0 0
        %1093 = vmatprep.subr.bf16.mxu0 0
        %1094 = vmatpush1.bf16.msra.mxu0 0
        %1095 = vmatprep.subr.bf16.mxu0 0
        %1096 = vmatpush1.bf16.msra.mxu0 0
        %1097 = vmatprep.subr.bf16.mxu0 0
        %1098 = vmatpush1.bf16.msra.mxu0 0
        %1099 = vmatprep.subr.bf16.mxu0 0
        %1100 = vmatpush1.bf16.msra.mxu0 0
        %1101 = vmatprep.subr.bf16.mxu0 0
        %1102 = vmatpush1.bf16.msra.mxu0 0
        %1103 = vmatprep.subr.bf16.mxu0 0
        %1104 = vmatpush1.bf16.msra.mxu0 0
        %1105 = vmatprep.mubr.bf16.mxu0 0
        %1106 = vmatmul.mubr.bf16.gmra.mrb[0].mxu0 %v1030
        %v1107 = vpop.f32.mrb[0].mxu0
        %v1108 = vadd.f32 0.0, %v1107
        %v1109 = vpop.f32.mrb[0].mxu0
        %v1110 = vpop.f32.mrb[0].mxu0
        %v1111 = vpop.f32.mrb[0].mxu0
        %1112 = vdwg.mxu0
        %v1113 = vld [vmem:[%s564] sm:$0xff]
        %v1114 = vld [vmem:[%s564 + $0x8] sm:$0xff]
        %v1115 = vld [vmem:[%s564 + $0x10] sm:$0xff]
        %v1116 = vadd.f32 %v1113, %v1067
        %v1117 = vadd.f32 %v1114, %v1069
        %v1118 = vadd.f32 %v1115, %v1108
        %1119 = vst [vmem:[%s564] sm:$0xff] %v1116
        %1120 = vst [vmem:[%s564 + $0x8] sm:$0xff] %v1117
        %1121 = vst.msk [vmem:[%s564 + $0x10] sm:$0xff] %vm353, %v1118
        %s1122 = scalar_lea.vmem %s239, 36
        %v1123 = vld [vmem:[%s1122] sm:$0xf]
        %v1125 = vsel %vm256, %v1123, 0
        %1127 = vmatprep.subr.bf16.mxu0 %v932
        %1128 = vmatpush1.bf16.msra.mxu0 %v929
        %1129 = vmatprep.subr.bf16.mxu0 0
        %1130 = vmatpush1.bf16.msra.mxu0 0
        %1131 = vmatprep.subr.bf16.mxu0 0
        %1132 = vmatpush1.bf16.msra.mxu0 0
        %1133 = vmatprep.subr.bf16.mxu0 0
        %1134 = vmatpush1.bf16.msra.mxu0 0
        %1135 = vmatprep.subr.bf16.mxu0 0
        %1136 = vmatpush1.bf16.msra.mxu0 0
        %1137 = vmatprep.subr.bf16.mxu0 0
        %1138 = vmatpush1.bf16.msra.mxu0 0
        %1139 = vmatprep.subr.bf16.mxu0 0
        %1140 = vmatpush1.bf16.msra.mxu0 0
        %1141 = vmatprep.subr.bf16.mxu0 0
        %1142 = vmatpush1.bf16.msra.mxu0 0
        %1143 = vmatprep.subr.bf16.mxu0 0
        %1144 = vmatpush1.bf16.msra.mxu0 0
        %1145 = vmatprep.subr.bf16.mxu0 0
        %1146 = vmatpush1.bf16.msra.mxu0 0
        %1147 = vmatprep.subr.bf16.mxu0 0
        %1148 = vmatpush1.bf16.msra.mxu0 0
        %1149 = vmatprep.subr.bf16.mxu0 0
        %1150 = vmatpush1.bf16.msra.mxu0 0
        %1151 = vmatprep.subr.bf16.mxu0 0
        %1152 = vmatpush1.bf16.msra.mxu0 0
        %1153 = vmatprep.subr.bf16.mxu0 0
        %1154 = vmatpush1.bf16.msra.mxu0 0
        %1155 = vmatprep.subr.bf16.mxu0 0
        %1156 = vmatpush1.bf16.msra.mxu0 0
        %1157 = vmatprep.subr.bf16.mxu0 0
        %1158 = vmatpush1.bf16.msra.mxu0 0
        %1159 = vmatprep.mubr.bf16.mxu0 0
        %1160 = vmatmul.mubr.bf16.gmra.mrb[0].mxu0 %v1125
        %v1161 = vpop.f32.mrb[0].mxu0
        %v1162 = vadd.f32 0.0, %v1161
        %v1163 = vpop.f32.mrb[0].mxu0
        %v1164 = vadd.f32 0.0, %v1163
        %v1165 = vpop.f32.mrb[0].mxu0
        %v1166 = vpop.f32.mrb[0].mxu0
        %1167 = vdwg.mxu0
        %1168 = vmatprep.subr.bf16.mxu0 0
        %1169 = vmatpush1.bf16.msra.mxu0 %v935
        %1170 = vmatprep.subr.bf16.mxu0 0
        %1171 = vmatpush1.bf16.msra.mxu0 0
        %1172 = vmatprep.subr.bf16.mxu0 0
        %1173 = vmatpush1.bf16.msra.mxu0 0
        %1174 = vmatprep.subr.bf16.mxu0 0
        %1175 = vmatpush1.bf16.msra.mxu0 0
        %1176 = vmatprep.subr.bf16.mxu0 0
        %1177 = vmatpush1.bf16.msra.mxu0 0
        %1178 = vmatprep.subr.bf16.mxu0 0
        %1179 = vmatpush1.bf16.msra.mxu0 0
        %1180 = vmatprep.subr.bf16.mxu0 0
        %1181 = vmatpush1.bf16.msra.mxu0 0
        %1182 = vmatprep.subr.bf16.mxu0 0
        %1183 = vmatpush1.bf16.msra.mxu0 0
        %1184 = vmatprep.subr.bf16.mxu0 0
        %1185 = vmatpush1.bf16.msra.mxu0 0
        %1186 = vmatprep.subr.bf16.mxu0 0
        %1187 = vmatpush1.bf16.msra.mxu0 0
        %1188 = vmatprep.subr.bf16.mxu0 0
        %1189 = vmatpush1.bf16.msra.mxu0 0
        %1190 = vmatprep.subr.bf16.mxu0 0
        %1191 = vmatpush1.bf16.msra.mxu0 0
        %1192 = vmatprep.subr.bf16.mxu0 0
        %1193 = vmatpush1.bf16.msra.mxu0 0
        %1194 = vmatprep.subr.bf16.mxu0 0
        %1195 = vmatpush1.bf16.msra.mxu0 0
        %1196 = vmatprep.subr.bf16.mxu0 0
        %1197 = vmatpush1.bf16.msra.mxu0 0
        %1198 = vmatprep.subr.bf16.mxu0 0
        %1199 = vmatpush1.bf16.msra.mxu0 0
        %1200 = vmatprep.mubr.bf16.mxu0 0
        %1201 = vmatmul.mubr.bf16.gmra.mrb[0].mxu0 %v1125
        %v1202 = vpop.f32.mrb[0].mxu0
        %v1203 = vadd.f32 0.0, %v1202
        %v1204 = vpop.f32.mrb[0].mxu0
        %v1205 = vpop.f32.mrb[0].mxu0
        %v1206 = vpop.f32.mrb[0].mxu0
        %1207 = vdwg.mxu0
        %v1208 = vld [vmem:[%s900] sm:$0xff]
        %v1209 = vld [vmem:[%s900 + $0x8] sm:$0xff]
        %v1210 = vld [vmem:[%s900 + $0x10] sm:$0xff]
        %v1211 = vadd.f32 %v1208, %v1162
        %v1212 = vadd.f32 %v1209, %v1164
        %v1213 = vadd.f32 %v1210, %v1203
        %1214 = vst [vmem:[%s900] sm:$0xff] %v1211
        %1215 = vst [vmem:[%s900 + $0x8] sm:$0xff] %v1212
        %1216 = vst.msk [vmem:[%s900 + $0x10] sm:$0xff] %vm353, %v1213
        %s1217 = scalar_lea.vmem %s239, 48
        %v1218 = vld [vmem:[%s1217] sm:$0xf]
        %v1220 = vsel %vm256, %v1218, 0
        %1222 = vmatprep.subr.bf16.mxu0 %v932
        %1223 = vmatpush1.bf16.msra.mxu0 %v929
        %1224 = vmatprep.subr.bf16.mxu0 0
        %1225 = vmatpush1.bf16.msra.mxu0 0
        %1226 = vmatprep.subr.bf16.mxu0 0
        %1227 = vmatpush1.bf16.msra.mxu0 0
        %1228 = vmatprep.subr.bf16.mxu0 0
        %1229 = vmatpush1.bf16.msra.mxu0 0
        %1230 = vmatprep.subr.bf16.mxu0 0
        %1231 = vmatpush1.bf16.msra.mxu0 0
        %1232 = vmatprep.subr.bf16.mxu0 0
        %1233 = vmatpush1.bf16.msra.mxu0 0
        %1234 = vmatprep.subr.bf16.mxu0 0
        %1235 = vmatpush1.bf16.msra.mxu0 0
        %1236 = vmatprep.subr.bf16.mxu0 0
        %1237 = vmatpush1.bf16.msra.mxu0 0
        %1238 = vmatprep.subr.bf16.mxu0 0
        %1239 = vmatpush1.bf16.msra.mxu0 0
        %1240 = vmatprep.subr.bf16.mxu0 0
        %1241 = vmatpush1.bf16.msra.mxu0 0
        %1242 = vmatprep.subr.bf16.mxu0 0
        %1243 = vmatpush1.bf16.msra.mxu0 0
        %1244 = vmatprep.subr.bf16.mxu0 0
        %1245 = vmatpush1.bf16.msra.mxu0 0
        %1246 = vmatprep.subr.bf16.mxu0 0
        %1247 = vmatpush1.bf16.msra.mxu0 0
        %1248 = vmatprep.subr.bf16.mxu0 0
        %1249 = vmatpush1.bf16.msra.mxu0 0
        %1250 = vmatprep.subr.bf16.mxu0 0
        %1251 = vmatpush1.bf16.msra.mxu0 0
        %1252 = vmatprep.subr.bf16.mxu0 0
        %1253 = vmatpush1.bf16.msra.mxu0 0
        %1254 = vmatprep.mubr.bf16.mxu0 0
        %1255 = vmatmul.mubr.bf16.gmra.mrb[0].mxu0 %v1220
        %v1256 = vpop.f32.mrb[0].mxu0
        %v1257 = vadd.f32 0.0, %v1256
        %v1258 = vpop.f32.mrb[0].mxu0
        %v1259 = vadd.f32 0.0, %v1258
        %v1260 = vpop.f32.mrb[0].mxu0
        %v1261 = vpop.f32.mrb[0].mxu0
        %1262 = vdwg.mxu0
        %1263 = vmatprep.subr.bf16.mxu0 0
        %1264 = vmatpush1.bf16.msra.mxu0 %v935
        %1265 = vmatprep.subr.bf16.mxu0 0
        %1266 = vmatpush1.bf16.msra.mxu0 0
        %1267 = vmatprep.subr.bf16.mxu0 0
        %1268 = vmatpush1.bf16.msra.mxu0 0
        %1269 = vmatprep.subr.bf16.mxu0 0
        %1270 = vmatpush1.bf16.msra.mxu0 0
        %1271 = vmatprep.subr.bf16.mxu0 0
        %1272 = vmatpush1.bf16.msra.mxu0 0
        %1273 = vmatprep.subr.bf16.mxu0 0
        %1274 = vmatpush1.bf16.msra.mxu0 0
        %1275 = vmatprep.subr.bf16.mxu0 0
        %1276 = vmatpush1.bf16.msra.mxu0 0
        %1277 = vmatprep.subr.bf16.mxu0 0
        %1278 = vmatpush1.bf16.msra.mxu0 0
        %1279 = vmatprep.subr.bf16.mxu0 0
        %1280 = vmatpush1.bf16.msra.mxu0 0
        %1281 = vmatprep.subr.bf16.mxu0 0
        %1282 = vmatpush1.bf16.msra.mxu0 0
        %1283 = vmatprep.subr.bf16.mxu0 0
        %1284 = vmatpush1.bf16.msra.mxu0 0
        %1285 = vmatprep.subr.bf16.mxu0 0
        %1286 = vmatpush1.bf16.msra.mxu0 0
        %1287 = vmatprep.subr.bf16.mxu0 0
        %1288 = vmatpush1.bf16.msra.mxu0 0
        %1289 = vmatprep.subr.bf16.mxu0 0
        %1290 = vmatpush1.bf16.msra.mxu0 0
        %1291 = vmatprep.subr.bf16.mxu0 0
        %1292 = vmatpush1.bf16.msra.mxu0 0
        %1293 = vmatprep.subr.bf16.mxu0 0
        %1294 = vmatpush1.bf16.msra.mxu0 0
        %1295 = vmatprep.mubr.bf16.mxu0 0
        %1296 = vmatmul.mubr.bf16.gmra.mrb[0].mxu0 %v1220
        %v1297 = vpop.f32.mrb[0].mxu0
        %v1298 = vadd.f32 0.0, %v1297
        %v1299 = vpop.f32.mrb[0].mxu0
        %v1300 = vpop.f32.mrb[0].mxu0
        %v1301 = vpop.f32.mrb[0].mxu0
        %1302 = vdwg.mxu0
        %s1303 = scalar_lea.vmem [#allocation2], 72
        %1304 = vst [vmem:[%s1303] sm:$0xff] %v1257
        %1305 = vst [vmem:[%s1303 + $0x8] sm:$0xff] %v1259
        %1306 = vst.msk [vmem:[%s1303 + $0x10] sm:$0xff] %vm353, %v1298
        %v1307 = vld [vmem:[%s235] sm:$0xff]
        %v1308 = vld [vmem:[%s235 + $0x8] sm:$0xf]
        %s1309 = scalar_lea.vmem %s239, 28
        %v1310 = vld [vmem:[%s1309] sm:$0xf]
        %v1313 = vunpack.c.l.b16 %v1307
        %v1314 = vunpack.c.h.b16 %v1307
        %v1315 = vunpack.c.l.b16 %v1308
        %v1316 = vpack.c.b16 %v1313, %v1313
        %v1317 = vpack.c.b16 %v1314, %v1314
        %v1318 = vpack.c.b16 %v1315, %v1315
        %1319 = vrot.lane.b32.xlu0 %v1316, 108
        %v1320 = vpop.permute.xlu0 %1319
        %1321 = vrot.lane.b32.xlu0 %v1317, 108
        %v1322 = vpop.permute.xlu0 %1321
        %1323 = vrot.lane.b32.xlu0 %v1318, 108
        %v1324 = vpop.permute.xlu0 %1323
        %vm1325 = vcmask 883712
        %v1326 = vsel %vm1325, %v1320, %v1322
        %v1327 = vsel %vm1325, %v1322, %v1324
        %v1329 = vsel %vm256, %v1310, 0
        %v1332 = vsel %vm260, %v1326, 0
        %v1335 = vsel %vm260, %v1327, 0
        %v1338 = vsel %vm260, %v1324, 0
        %1340 = vmatprep.subr.bf16.mxu0 %v1335
        %1341 = vmatpush1.bf16.msra.mxu0 %v1332
        %1342 = vmatprep.subr.bf16.mxu0 0
        %1343 = vmatpush1.bf16.msra.mxu0 0
        %1344 = vmatprep.subr.bf16.mxu0 0
        %1345 = vmatpush1.bf16.msra.mxu0 0
        %1346 = vmatprep.subr.bf16.mxu0 0
        %1347 = vmatpush1.bf16.msra.mxu0 0
        %1348 = vmatprep.subr.bf16.mxu0 0
        %1349 = vmatpush1.bf16.msra.mxu0 0
        %1350 = vmatprep.subr.bf16.mxu0 0
        %1351 = vmatpush1.bf16.msra.mxu0 0
        %1352 = vmatprep.subr.bf16.mxu0 0
        %1353 = vmatpush1.bf16.msra.mxu0 0
        %1354 = vmatprep.subr.bf16.mxu0 0
        %1355 = vmatpush1.bf16.msra.mxu0 0
        %1356 = vmatprep.subr.bf16.mxu0 0
        %1357 = vmatpush1.bf16.msra.mxu0 0
        %1358 = vmatprep.subr.bf16.mxu0 0
        %1359 = vmatpush1.bf16.msra.mxu0 0
        %1360 = vmatprep.subr.bf16.mxu0 0
        %1361 = vmatpush1.bf16.msra.mxu0 0
        %1362 = vmatprep.subr.bf16.mxu0 0
        %1363 = vmatpush1.bf16.msra.mxu0 0
        %1364 = vmatprep.subr.bf16.mxu0 0
        %1365 = vmatpush1.bf16.msra.mxu0 0
        %1366 = vmatprep.subr.bf16.mxu0 0
        %1367 = vmatpush1.bf16.msra.mxu0 0
        %1368 = vmatprep.subr.bf16.mxu0 0
        %1369 = vmatpush1.bf16.msra.mxu0 0
        %1370 = vmatprep.subr.bf16.mxu0 0
        %1371 = vmatpush1.bf16.msra.mxu0 0
        %1372 = vmatprep.mubr.bf16.mxu0 0
        %1373 = vmatmul.mubr.bf16.gmra.mrb[0].mxu0 %v1329
        %v1374 = vpop.f32.mrb[0].mxu0
        %v1375 = vadd.f32 0.0, %v1374
        %v1376 = vpop.f32.mrb[0].mxu0
        %v1377 = vadd.f32 0.0, %v1376
        %v1378 = vpop.f32.mrb[0].mxu0
        %v1379 = vpop.f32.mrb[0].mxu0
        %1380 = vdwg.mxu0
        %1381 = vmatprep.subr.bf16.mxu0 0
        %1382 = vmatpush1.bf16.msra.mxu0 %v1338
        %1383 = vmatprep.subr.bf16.mxu0 0
        %1384 = vmatpush1.bf16.msra.mxu0 0
        %1385 = vmatprep.subr.bf16.mxu0 0
        %1386 = vmatpush1.bf16.msra.mxu0 0
        %1387 = vmatprep.subr.bf16.mxu0 0
        %1388 = vmatpush1.bf16.msra.mxu0 0
        %1389 = vmatprep.subr.bf16.mxu0 0
        %1390 = vmatpush1.bf16.msra.mxu0 0
        %1391 = vmatprep.subr.bf16.mxu0 0
        %1392 = vmatpush1.bf16.msra.mxu0 0
        %1393 = vmatprep.subr.bf16.mxu0 0
        %1394 = vmatpush1.bf16.msra.mxu0 0
        %1395 = vmatprep.subr.bf16.mxu0 0
        %1396 = vmatpush1.bf16.msra.mxu0 0
        %1397 = vmatprep.subr.bf16.mxu0 0
        %1398 = vmatpush1.bf16.msra.mxu0 0
        %1399 = vmatprep.subr.bf16.mxu0 0
        %1400 = vmatpush1.bf16.msra.mxu0 0
        %1401 = vmatprep.subr.bf16.mxu0 0
        %1402 = vmatpush1.bf16.msra.mxu0 0
        %1403 = vmatprep.subr.bf16.mxu0 0
        %1404 = vmatpush1.bf16.msra.mxu0 0
        %1405 = vmatprep.subr.bf16.mxu0 0
        %1406 = vmatpush1.bf16.msra.mxu0 0
        %1407 = vmatprep.subr.bf16.mxu0 0
        %1408 = vmatpush1.bf16.msra.mxu0 0
        %1409 = vmatprep.subr.bf16.mxu0 0
        %1410 = vmatpush1.bf16.msra.mxu0 0
        %1411 = vmatprep.subr.bf16.mxu0 0
        %1412 = vmatpush1.bf16.msra.mxu0 0
        %1413 = vmatprep.mubr.bf16.mxu0 0
        %1414 = vmatmul.mubr.bf16.gmra.mrb[0].mxu0 %v1329
        %v1415 = vpop.f32.mrb[0].mxu0
        %v1416 = vadd.f32 0.0, %v1415
        %v1417 = vpop.f32.mrb[0].mxu0
        %v1418 = vpop.f32.mrb[0].mxu0
        %v1419 = vpop.f32.mrb[0].mxu0
        %1420 = vdwg.mxu0
        %v1421 = vld [vmem:[%s564] sm:$0xff]
        %v1422 = vld [vmem:[%s564 + $0x8] sm:$0xff]
        %v1423 = vld [vmem:[%s564 + $0x10] sm:$0xff]
        %v1424 = vadd.f32 %v1421, %v1375
        %v1425 = vadd.f32 %v1422, %v1377
        %v1426 = vadd.f32 %v1423, %v1416
        %1427 = vst [vmem:[%s564] sm:$0xff] %v1424
        %1428 = vst [vmem:[%s564 + $0x8] sm:$0xff] %v1425
        %1429 = vst.msk [vmem:[%s564 + $0x10] sm:$0xff] %vm353, %v1426
        %s1430 = scalar_lea.vmem %s239, 52
        %v1431 = vld [vmem:[%s1430] sm:$0xf]
        %v1433 = vsel %vm256, %v1431, 0
        %1435 = vmatprep.subr.bf16.mxu0 %v1335
        %1436 = vmatpush1.bf16.msra.mxu0 %v1332
        %1437 = vmatprep.subr.bf16.mxu0 0
        %1438 = vmatpush1.bf16.msra.mxu0 0
        %1439 = vmatprep.subr.bf16.mxu0 0
        %1440 = vmatpush1.bf16.msra.mxu0 0
        %1441 = vmatprep.subr.bf16.mxu0 0
        %1442 = vmatpush1.bf16.msra.mxu0 0
        %1443 = vmatprep.subr.bf16.mxu0 0
        %1444 = vmatpush1.bf16.msra.mxu0 0
        %1445 = vmatprep.subr.bf16.mxu0 0
        %1446 = vmatpush1.bf16.msra.mxu0 0
        %1447 = vmatprep.subr.bf16.mxu0 0
        %1448 = vmatpush1.bf16.msra.mxu0 0
        %1449 = vmatprep.subr.bf16.mxu0 0
        %1450 = vmatpush1.bf16.msra.mxu0 0
        %1451 = vmatprep.subr.bf16.mxu0 0
        %1452 = vmatpush1.bf16.msra.mxu0 0
        %1453 = vmatprep.subr.bf16.mxu0 0
        %1454 = vmatpush1.bf16.msra.mxu0 0
        %1455 = vmatprep.subr.bf16.mxu0 0
        %1456 = vmatpush1.bf16.msra.mxu0 0
        %1457 = vmatprep.subr.bf16.mxu0 0
        %1458 = vmatpush1.bf16.msra.mxu0 0
        %1459 = vmatprep.subr.bf16.mxu0 0
        %1460 = vmatpush1.bf16.msra.mxu0 0
        %1461 = vmatprep.subr.bf16.mxu0 0
        %1462 = vmatpush1.bf16.msra.mxu0 0
        %1463 = vmatprep.subr.bf16.mxu0 0
        %1464 = vmatpush1.bf16.msra.mxu0 0
        %1465 = vmatprep.subr.bf16.mxu0 0
        %1466 = vmatpush1.bf16.msra.mxu0 0
        %1467 = vmatprep.mubr.bf16.mxu0 0
        %1468 = vmatmul.mubr.bf16.gmra.mrb[0].mxu0 %v1433
        %v1469 = vpop.f32.mrb[0].mxu0
        %v1470 = vadd.f32 0.0, %v1469
        %v1471 = vpop.f32.mrb[0].mxu0
        %v1472 = vadd.f32 0.0, %v1471
        %v1473 = vpop.f32.mrb[0].mxu0
        %v1474 = vpop.f32.mrb[0].mxu0
        %1475 = vdwg.mxu0
        %1476 = vmatprep.subr.bf16.mxu0 0
        %1477 = vmatpush1.bf16.msra.mxu0 %v1338
        %1478 = vmatprep.subr.bf16.mxu0 0
        %1479 = vmatpush1.bf16.msra.mxu0 0
        %1480 = vmatprep.subr.bf16.mxu0 0
        %1481 = vmatpush1.bf16.msra.mxu0 0
        %1482 = vmatprep.subr.bf16.mxu0 0
        %1483 = vmatpush1.bf16.msra.mxu0 0
        %1484 = vmatprep.subr.bf16.mxu0 0
        %1485 = vmatpush1.bf16.msra.mxu0 0
        %1486 = vmatprep.subr.bf16.mxu0 0
        %1487 = vmatpush1.bf16.msra.mxu0 0
        %1488 = vmatprep.subr.bf16.mxu0 0
        %1489 = vmatpush1.bf16.msra.mxu0 0
        %1490 = vmatprep.subr.bf16.mxu0 0
        %1491 = vmatpush1.bf16.msra.mxu0 0
        %1492 = vmatprep.subr.bf16.mxu0 0
        %1493 = vmatpush1.bf16.msra.mxu0 0
        %1494 = vmatprep.subr.bf16.mxu0 0
        %1495 = vmatpush1.bf16.msra.mxu0 0
        %1496 = vmatprep.subr.bf16.mxu0 0
        %1497 = vmatpush1.bf16.msra.mxu0 0
        %1498 = vmatprep.subr.bf16.mxu0 0
        %1499 = vmatpush1.bf16.msra.mxu0 0
        %1500 = vmatprep.subr.bf16.mxu0 0
        %1501 = vmatpush1.bf16.msra.mxu0 0
        %1502 = vmatprep.subr.bf16.mxu0 0
        %1503 = vmatpush1.bf16.msra.mxu0 0
        %1504 = vmatprep.subr.bf16.mxu0 0
        %1505 = vmatpush1.bf16.msra.mxu0 0
        %1506 = vmatprep.subr.bf16.mxu0 0
        %1507 = vmatpush1.bf16.msra.mxu0 0
        %1508 = vmatprep.mubr.bf16.mxu0 0
        %1509 = vmatmul.mubr.bf16.gmra.mrb[0].mxu0 %v1433
        %v1510 = vpop.f32.mrb[0].mxu0
        %v1511 = vadd.f32 0.0, %v1510
        %v1512 = vpop.f32.mrb[0].mxu0
        %v1513 = vpop.f32.mrb[0].mxu0
        %v1514 = vpop.f32.mrb[0].mxu0
        %1515 = vdwg.mxu0
        %v1516 = vld [vmem:[%s1303] sm:$0xff]
        %v1517 = vld [vmem:[%s1303 + $0x8] sm:$0xff]
        %v1518 = vld [vmem:[%s1303 + $0x10] sm:$0xff]
        %v1519 = vadd.f32 %v1516, %v1470
        %v1520 = vadd.f32 %v1517, %v1472
        %v1521 = vadd.f32 %v1518, %v1511
        %1522 = vst [vmem:[%s1303] sm:$0xff] %v1519
        %1523 = vst [vmem:[%s1303 + $0x8] sm:$0xff] %v1520
        %1524 = vst.msk [vmem:[%s1303 + $0x10] sm:$0xff] %vm353, %v1521
        %v1525 = vld [vmem:[%s235] sm:$0xff]
        %v1526 = vld [vmem:[%s235 + $0x8] sm:$0xf]
        %s1527 = scalar_lea.vmem %s239, 40
        %v1528 = vld [vmem:[%s1527] sm:$0xf]
        %v1531 = vunpack.c.l.b16 %v1525
        %v1532 = vunpack.c.h.b16 %v1525
        %v1533 = vunpack.c.l.b16 %v1526
        %v1534 = vpack.c.b16 %v1531, %v1531
        %v1535 = vpack.c.b16 %v1532, %v1532
        %v1536 = vpack.c.b16 %v1533, %v1533
        %1537 = vrot.lane.b32.xlu0 %v1534, 92
        %v1538 = vpop.permute.xlu0 %1537
        %1539 = vrot.lane.b32.xlu0 %v1535, 92
        %v1540 = vpop.permute.xlu0 %1539
        %1541 = vrot.lane.b32.xlu0 %v1536, 92
        %v1542 = vpop.permute.xlu0 %1541
        %vm1543 = vcmask 752640
        %v1544 = vsel %vm1543, %v1538, %v1540
        %v1545 = vsel %vm1543, %v1540, %v1542
        %v1547 = vsel %vm256, %v1528, 0
        %v1550 = vsel %vm260, %v1544, 0
        %v1553 = vsel %vm260, %v1545, 0
        %v1556 = vsel %vm260, %v1542, 0
        %1558 = vmatprep.subr.bf16.mxu0 %v1553
        %1559 = vmatpush1.bf16.msra.mxu0 %v1550
        %1560 = vmatprep.subr.bf16.mxu0 0
        %1561 = vmatpush1.bf16.msra.mxu0 0
        %1562 = vmatprep.subr.bf16.mxu0 0
        %1563 = vmatpush1.bf16.msra.mxu0 0
        %1564 = vmatprep.subr.bf16.mxu0 0
        %1565 = vmatpush1.bf16.msra.mxu0 0
        %1566 = vmatprep.subr.bf16.mxu0 0
        %1567 = vmatpush1.bf16.msra.mxu0 0
        %1568 = vmatprep.subr.bf16.mxu0 0
        %1569 = vmatpush1.bf16.msra.mxu0 0
        %1570 = vmatprep.subr.bf16.mxu0 0
        %1571 = vmatpush1.bf16.msra.mxu0 0
        %1572 = vmatprep.subr.bf16.mxu0 0
        %1573 = vmatpush1.bf16.msra.mxu0 0
        %1574 = vmatprep.subr.bf16.mxu0 0
        %1575 = vmatpush1.bf16.msra.mxu0 0
        %1576 = vmatprep.subr.bf16.mxu0 0
        %1577 = vmatpush1.bf16.msra.mxu0 0
        %1578 = vmatprep.subr.bf16.mxu0 0
        %1579 = vmatpush1.bf16.msra.mxu0 0
        %1580 = vmatprep.subr.bf16.mxu0 0
        %1581 = vmatpush1.bf16.msra.mxu0 0
        %1582 = vmatprep.subr.bf16.mxu0 0
        %1583 = vmatpush1.bf16.msra.mxu0 0
        %1584 = vmatprep.subr.bf16.mxu0 0
        %1585 = vmatpush1.bf16.msra.mxu0 0
        %1586 = vmatprep.subr.bf16.mxu0 0
        %1587 = vmatpush1.bf16.msra.mxu0 0
        %1588 = vmatprep.subr.bf16.mxu0 0
        %1589 = vmatpush1.bf16.msra.mxu0 0
        %1590 = vmatprep.mubr.bf16.mxu0 0
        %1591 = vmatmul.mubr.bf16.gmra.mrb[0].mxu0 %v1547
        %v1592 = vpop.f32.mrb[0].mxu0
        %v1593 = vadd.f32 0.0, %v1592
        %v1594 = vpop.f32.mrb[0].mxu0
        %v1595 = vadd.f32 0.0, %v1594
        %v1596 = vpop.f32.mrb[0].mxu0
        %v1597 = vpop.f32.mrb[0].mxu0
        %1598 = vdwg.mxu0
        %1599 = vmatprep.subr.bf16.mxu0 0
        %1600 = vmatpush1.bf16.msra.mxu0 %v1556
        %1601 = vmatprep.subr.bf16.mxu0 0
        %1602 = vmatpush1.bf16.msra.mxu0 0
        %1603 = vmatprep.subr.bf16.mxu0 0
        %1604 = vmatpush1.bf16.msra.mxu0 0
        %1605 = vmatprep.subr.bf16.mxu0 0
        %1606 = vmatpush1.bf16.msra.mxu0 0
        %1607 = vmatprep.subr.bf16.mxu0 0
        %1608 = vmatpush1.bf16.msra.mxu0 0
        %1609 = vmatprep.subr.bf16.mxu0 0
        %1610 = vmatpush1.bf16.msra.mxu0 0
        %1611 = vmatprep.subr.bf16.mxu0 0
        %1612 = vmatpush1.bf16.msra.mxu0 0
        %1613 = vmatprep.subr.bf16.mxu0 0
        %1614 = vmatpush1.bf16.msra.mxu0 0
        %1615 = vmatprep.subr.bf16.mxu0 0
        %1616 = vmatpush1.bf16.msra.mxu0 0
        %1617 = vmatprep.subr.bf16.mxu0 0
        %1618 = vmatpush1.bf16.msra.mxu0 0
        %1619 = vmatprep.subr.bf16.mxu0 0
        %1620 = vmatpush1.bf16.msra.mxu0 0
        %1621 = vmatprep.subr.bf16.mxu0 0
        %1622 = vmatpush1.bf16.msra.mxu0 0
        %1623 = vmatprep.subr.bf16.mxu0 0
        %1624 = vmatpush1.bf16.msra.mxu0 0
        %1625 = vmatprep.subr.bf16.mxu0 0
        %1626 = vmatpush1.bf16.msra.mxu0 0
        %1627 = vmatprep.subr.bf16.mxu0 0
        %1628 = vmatpush1.bf16.msra.mxu0 0
        %1629 = vmatprep.subr.bf16.mxu0 0
        %1630 = vmatpush1.bf16.msra.mxu0 0
        %1631 = vmatprep.mubr.bf16.mxu0 0
        %1632 = vmatmul.mubr.bf16.gmra.mrb[0].mxu0 %v1547
        %v1633 = vpop.f32.mrb[0].mxu0
        %v1634 = vadd.f32 0.0, %v1633
        %v1635 = vpop.f32.mrb[0].mxu0
        %v1636 = vpop.f32.mrb[0].mxu0
        %v1637 = vpop.f32.mrb[0].mxu0
        %1638 = vdwg.mxu0
        %v1639 = vld [vmem:[%s900] sm:$0xff]
        %v1640 = vld [vmem:[%s900 + $0x8] sm:$0xff]
        %v1641 = vld [vmem:[%s900 + $0x10] sm:$0xff]
        %v1642 = vadd.f32 %v1639, %v1593
        %v1643 = vadd.f32 %v1640, %v1595
        %v1644 = vadd.f32 %v1641, %v1634
        %1645 = vst [vmem:[%s900] sm:$0xff] %v1642
        %1646 = vst [vmem:[%s900 + $0x8] sm:$0xff] %v1643
        %1647 = vst.msk [vmem:[%s900 + $0x10] sm:$0xff] %vm353, %v1644
        %v1648 = vld [vmem:[%s235] sm:$0xff]
        %v1649 = vld [vmem:[%s235 + $0x8] sm:$0xf]
        %s1650 = scalar_lea.vmem %s239, 44
        %v1651 = vld [vmem:[%s1650] sm:$0xf]
        %v1654 = vunpack.c.l.b16 %v1648
        %v1655 = vunpack.c.h.b16 %v1648
        %v1656 = vunpack.c.l.b16 %v1649
        %v1657 = vpack.c.b16 %v1654, %v1654
        %v1658 = vpack.c.b16 %v1655, %v1655
        %v1659 = vpack.c.b16 %v1656, %v1656
        %1660 = vrot.lane.b32.xlu0 %v1657, 91
        %v1661 = vpop.permute.xlu0 %1660
        %1662 = vrot.lane.b32.xlu0 %v1658, 91
        %v1663 = vpop.permute.xlu0 %1662
        %1664 = vrot.lane.b32.xlu0 %v1659, 91
        %v1665 = vpop.permute.xlu0 %1664
        %vm1666 = vcmask 744448
        %v1667 = vsel %vm1666, %v1661, %v1663
        %v1668 = vsel %vm1666, %v1663, %v1665
        %v1670 = vsel %vm256, %v1651, 0
        %v1673 = vsel %vm260, %v1667, 0
        %v1676 = vsel %vm260, %v1668, 0
        %v1679 = vsel %vm260, %v1665, 0
        %1681 = vmatprep.subr.bf16.mxu0 %v1676
        %1682 = vmatpush1.bf16.msra.mxu0 %v1673
        %1683 = vmatprep.subr.bf16.mxu0 0
        %1684 = vmatpush1.bf16.msra.mxu0 0
        %1685 = vmatprep.subr.bf16.mxu0 0
        %1686 = vmatpush1.bf16.msra.mxu0 0
        %1687 = vmatprep.subr.bf16.mxu0 0
        %1688 = vmatpush1.bf16.msra.mxu0 0
        %1689 = vmatprep.subr.bf16.mxu0 0
        %1690 = vmatpush1.bf16.msra.mxu0 0
        %1691 = vmatprep.subr.bf16.mxu0 0
        %1692 = vmatpush1.bf16.msra.mxu0 0
        %1693 = vmatprep.subr.bf16.mxu0 0
        %1694 = vmatpush1.bf16.msra.mxu0 0
        %1695 = vmatprep.subr.bf16.mxu0 0
        %1696 = vmatpush1.bf16.msra.mxu0 0
        %1697 = vmatprep.subr.bf16.mxu0 0
        %1698 = vmatpush1.bf16.msra.mxu0 0
        %1699 = vmatprep.subr.bf16.mxu0 0
        %1700 = vmatpush1.bf16.msra.mxu0 0
        %1701 = vmatprep.subr.bf16.mxu0 0
        %1702 = vmatpush1.bf16.msra.mxu0 0
        %1703 = vmatprep.subr.bf16.mxu0 0
        %1704 = vmatpush1.bf16.msra.mxu0 0
        %1705 = vmatprep.subr.bf16.mxu0 0
        %1706 = vmatpush1.bf16.msra.mxu0 0
        %1707 = vmatprep.subr.bf16.mxu0 0
        %1708 = vmatpush1.bf16.msra.mxu0 0
        %1709 = vmatprep.subr.bf16.mxu0 0
        %1710 = vmatpush1.bf16.msra.mxu0 0
        %1711 = vmatprep.subr.bf16.mxu0 0
        %1712 = vmatpush1.bf16.msra.mxu0 0
        %1713 = vmatprep.mubr.bf16.mxu0 0
        %1714 = vmatmul.mubr.bf16.gmra.mrb[0].mxu0 %v1670
        %v1715 = vpop.f32.mrb[0].mxu0
        %v1716 = vadd.f32 0.0, %v1715
        %v1717 = vpop.f32.mrb[0].mxu0
        %v1718 = vadd.f32 0.0, %v1717
        %v1719 = vpop.f32.mrb[0].mxu0
        %v1720 = vpop.f32.mrb[0].mxu0
        %1721 = vdwg.mxu0
        %1722 = vmatprep.subr.bf16.mxu0 0
        %1723 = vmatpush1.bf16.msra.mxu0 %v1679
        %1724 = vmatprep.subr.bf16.mxu0 0
        %1725 = vmatpush1.bf16.msra.mxu0 0
        %1726 = vmatprep.subr.bf16.mxu0 0
        %1727 = vmatpush1.bf16.msra.mxu0 0
        %1728 = vmatprep.subr.bf16.mxu0 0
        %1729 = vmatpush1.bf16.msra.mxu0 0
        %1730 = vmatprep.subr.bf16.mxu0 0
        %1731 = vmatpush1.bf16.msra.mxu0 0
        %1732 = vmatprep.subr.bf16.mxu0 0
        %1733 = vmatpush1.bf16.msra.mxu0 0
        %1734 = vmatprep.subr.bf16.mxu0 0
        %1735 = vmatpush1.bf16.msra.mxu0 0
        %1736 = vmatprep.subr.bf16.mxu0 0
        %1737 = vmatpush1.bf16.msra.mxu0 0
        %1738 = vmatprep.subr.bf16.mxu0 0
        %1739 = vmatpush1.bf16.msra.mxu0 0
        %1740 = vmatprep.subr.bf16.mxu0 0
        %1741 = vmatpush1.bf16.msra.mxu0 0
        %1742 = vmatprep.subr.bf16.mxu0 0
        %1743 = vmatpush1.bf16.msra.mxu0 0
        %1744 = vmatprep.subr.bf16.mxu0 0
        %1745 = vmatpush1.bf16.msra.mxu0 0
        %1746 = vmatprep.subr.bf16.mxu0 0
        %1747 = vmatpush1.bf16.msra.mxu0 0
        %1748 = vmatprep.subr.bf16.mxu0 0
        %1749 = vmatpush1.bf16.msra.mxu0 0
        %1750 = vmatprep.subr.bf16.mxu0 0
        %1751 = vmatpush1.bf16.msra.mxu0 0
        %1752 = vmatprep.subr.bf16.mxu0 0
        %1753 = vmatpush1.bf16.msra.mxu0 0
        %1754 = vmatprep.mubr.bf16.mxu0 0
        %1755 = vmatmul.mubr.bf16.gmra.mrb[0].mxu0 %v1670
        %v1756 = vpop.f32.mrb[0].mxu0
        %v1757 = vadd.f32 0.0, %v1756
        %v1758 = vpop.f32.mrb[0].mxu0
        %v1759 = vpop.f32.mrb[0].mxu0
        %v1760 = vpop.f32.mrb[0].mxu0
        %1761 = vdwg.mxu0
        %v1762 = vld [vmem:[%s900] sm:$0xff]
        %v1763 = vld [vmem:[%s900 + $0x8] sm:$0xff]
        %v1764 = vld [vmem:[%s900 + $0x10] sm:$0xff]
        %v1765 = vadd.f32 %v1762, %v1716
        %v1766 = vadd.f32 %v1763, %v1718
        %v1767 = vadd.f32 %v1764, %v1757
        %1768 = vst [vmem:[%s900] sm:$0xff] %v1765
        %1769 = vst [vmem:[%s900 + $0x8] sm:$0xff] %v1766
        %1770 = vst.msk [vmem:[%s900 + $0x10] sm:$0xff] %vm353, %v1767
        %s1771 = scalar_lea.vmem %s239, 56
        %v1772 = vld [vmem:[%s1771] sm:$0xf]
        %v1774 = vsel %vm256, %v1772, 0
        %1776 = vmatprep.subr.bf16.mxu0 %v1676
        %1777 = vmatpush1.bf16.msra.mxu0 %v1673
        %1778 = vmatprep.subr.bf16.mxu0 0
        %1779 = vmatpush1.bf16.msra.mxu0 0
        %1780 = vmatprep.subr.bf16.mxu0 0
        %1781 = vmatpush1.bf16.msra.mxu0 0
        %1782 = vmatprep.subr.bf16.mxu0 0
        %1783 = vmatpush1.bf16.msra.mxu0 0
        %1784 = vmatprep.subr.bf16.mxu0 0
        %1785 = vmatpush1.bf16.msra.mxu0 0
        %1786 = vmatprep.subr.bf16.mxu0 0
        %1787 = vmatpush1.bf16.msra.mxu0 0
        %1788 = vmatprep.subr.bf16.mxu0 0
        %1789 = vmatpush1.bf16.msra.mxu0 0
        %1790 = vmatprep.subr.bf16.mxu0 0
        %1791 = vmatpush1.bf16.msra.mxu0 0
        %1792 = vmatprep.subr.bf16.mxu0 0
        %1793 = vmatpush1.bf16.msra.mxu0 0
        %1794 = vmatprep.subr.bf16.mxu0 0
        %1795 = vmatpush1.bf16.msra.mxu0 0
        %1796 = vmatprep.subr.bf16.mxu0 0
        %1797 = vmatpush1.bf16.msra.mxu0 0
        %1798 = vmatprep.subr.bf16.mxu0 0
        %1799 = vmatpush1.bf16.msra.mxu0 0
        %1800 = vmatprep.subr.bf16.mxu0 0
        %1801 = vmatpush1.bf16.msra.mxu0 0
        %1802 = vmatprep.subr.bf16.mxu0 0
        %1803 = vmatpush1.bf16.msra.mxu0 0
        %1804 = vmatprep.subr.bf16.mxu0 0
        %1805 = vmatpush1.bf16.msra.mxu0 0
        %1806 = vmatprep.subr.bf16.mxu0 0
        %1807 = vmatpush1.bf16.msra.mxu0 0
        %1808 = vmatprep.mubr.bf16.mxu0 0
        %1809 = vmatmul.mubr.bf16.gmra.mrb[0].mxu0 %v1774
        %v1810 = vpop.f32.mrb[0].mxu0
        %v1811 = vadd.f32 0.0, %v1810
        %v1812 = vpop.f32.mrb[0].mxu0
        %v1813 = vadd.f32 0.0, %v1812
        %v1814 = vpop.f32.mrb[0].mxu0
        %v1815 = vpop.f32.mrb[0].mxu0
        %1816 = vdwg.mxu0
        %1817 = vmatprep.subr.bf16.mxu0 0
        %1818 = vmatpush1.bf16.msra.mxu0 %v1679
        %1819 = vmatprep.subr.bf16.mxu0 0
        %1820 = vmatpush1.bf16.msra.mxu0 0
        %1821 = vmatprep.subr.bf16.mxu0 0
        %1822 = vmatpush1.bf16.msra.mxu0 0
        %1823 = vmatprep.subr.bf16.mxu0 0
        %1824 = vmatpush1.bf16.msra.mxu0 0
        %1825 = vmatprep.subr.bf16.mxu0 0
        %1826 = vmatpush1.bf16.msra.mxu0 0
        %1827 = vmatprep.subr.bf16.mxu0 0
        %1828 = vmatpush1.bf16.msra.mxu0 0
        %1829 = vmatprep.subr.bf16.mxu0 0
        %1830 = vmatpush1.bf16.msra.mxu0 0
        %1831 = vmatprep.subr.bf16.mxu0 0
        %1832 = vmatpush1.bf16.msra.mxu0 0
        %1833 = vmatprep.subr.bf16.mxu0 0
        %1834 = vmatpush1.bf16.msra.mxu0 0
        %1835 = vmatprep.subr.bf16.mxu0 0
        %1836 = vmatpush1.bf16.msra.mxu0 0
        %1837 = vmatprep.subr.bf16.mxu0 0
        %1838 = vmatpush1.bf16.msra.mxu0 0
        %1839 = vmatprep.subr.bf16.mxu0 0
        %1840 = vmatpush1.bf16.msra.mxu0 0
        %1841 = vmatprep.subr.bf16.mxu0 0
        %1842 = vmatpush1.bf16.msra.mxu0 0
        %1843 = vmatprep.subr.bf16.mxu0 0
        %1844 = vmatpush1.bf16.msra.mxu0 0
        %1845 = vmatprep.subr.bf16.mxu0 0
        %1846 = vmatpush1.bf16.msra.mxu0 0
        %1847 = vmatprep.subr.bf16.mxu0 0
        %1848 = vmatpush1.bf16.msra.mxu0 0
        %1849 = vmatprep.mubr.bf16.mxu0 0
        %1850 = vmatmul.mubr.bf16.gmra.mrb[0].mxu0 %v1774
        %v1851 = vpop.f32.mrb[0].mxu0
        %v1852 = vadd.f32 0.0, %v1851
        %v1853 = vpop.f32.mrb[0].mxu0
        %v1854 = vpop.f32.mrb[0].mxu0
        %v1855 = vpop.f32.mrb[0].mxu0
        %1856 = vdwg.mxu0
        %v1857 = vld [vmem:[%s1303] sm:$0xff]
        %v1858 = vld [vmem:[%s1303 + $0x8] sm:$0xff]
        %v1859 = vld [vmem:[%s1303 + $0x10] sm:$0xff]
        %v1860 = vadd.f32 %v1857, %v1811
        %v1861 = vadd.f32 %v1858, %v1813
        %v1862 = vadd.f32 %v1859, %v1852
        %1863 = vst [vmem:[%s1303] sm:$0xff] %v1860
        %1864 = vst [vmem:[%s1303 + $0x8] sm:$0xff] %v1861
        %1865 = vst.msk [vmem:[%s1303 + $0x10] sm:$0xff] %vm353, %v1862
        %v1866 = vld [vmem:[%s235] sm:$0xff]
        %v1867 = vld [vmem:[%s235 + $0x8] sm:$0xf]
        %s1868 = scalar_lea.vmem %s239, 60
        %v1869 = vld [vmem:[%s1868] sm:$0xf]
        %v1872 = vunpack.c.l.b16 %v1866
        %v1873 = vunpack.c.h.b16 %v1866
        %v1874 = vunpack.c.l.b16 %v1867
        %v1875 = vpack.c.b16 %v1872, %v1872
        %v1876 = vpack.c.b16 %v1873, %v1873
        %v1877 = vpack.c.b16 %v1874, %v1874
        %1878 = vrot.lane.b32.xlu0 %v1875, 90
        %v1879 = vpop.permute.xlu0 %1878
        %1880 = vrot.lane.b32.xlu0 %v1876, 90
        %v1881 = vpop.permute.xlu0 %1880
        %1882 = vrot.lane.b32.xlu0 %v1877, 90
        %v1883 = vpop.permute.xlu0 %1882
        %vm1884 = vcmask 736256
        %v1885 = vsel %vm1884, %v1879, %v1881
        %v1886 = vsel %vm1884, %v1881, %v1883
        %v1888 = vsel %vm256, %v1869, 0
        %v1891 = vsel %vm260, %v1885, 0
        %v1894 = vsel %vm260, %v1886, 0
        %v1897 = vsel %vm260, %v1883, 0
        %1899 = vmatprep.subr.bf16.mxu0 %v1894
        %1900 = vmatpush1.bf16.msra.mxu0 %v1891
        %1901 = vmatprep.subr.bf16.mxu0 0
        %1902 = vmatpush1.bf16.msra.mxu0 0
        %1903 = vmatprep.subr.bf16.mxu0 0
        %1904 = vmatpush1.bf16.msra.mxu0 0
        %1905 = vmatprep.subr.bf16.mxu0 0
        %1906 = vmatpush1.bf16.msra.mxu0 0
        %1907 = vmatprep.subr.bf16.mxu0 0
        %1908 = vmatpush1.bf16.msra.mxu0 0
        %1909 = vmatprep.subr.bf16.mxu0 0
        %1910 = vmatpush1.bf16.msra.mxu0 0
        %1911 = vmatprep.subr.bf16.mxu0 0
        %1912 = vmatpush1.bf16.msra.mxu0 0
        %1913 = vmatprep.subr.bf16.mxu0 0
        %1914 = vmatpush1.bf16.msra.mxu0 0
        %1915 = vmatprep.subr.bf16.mxu0 0
        %1916 = vmatpush1.bf16.msra.mxu0 0
        %1917 = vmatprep.subr.bf16.mxu0 0
        %1918 = vmatpush1.bf16.msra.mxu0 0
        %1919 = vmatprep.subr.bf16.mxu0 0
        %1920 = vmatpush1.bf16.msra.mxu0 0
        %1921 = vmatprep.subr.bf16.mxu0 0
        %1922 = vmatpush1.bf16.msra.mxu0 0
        %1923 = vmatprep.subr.bf16.mxu0 0
        %1924 = vmatpush1.bf16.msra.mxu0 0
        %1925 = vmatprep.subr.bf16.mxu0 0
        %1926 = vmatpush1.bf16.msra.mxu0 0
        %1927 = vmatprep.subr.bf16.mxu0 0
        %1928 = vmatpush1.bf16.msra.mxu0 0
        %1929 = vmatprep.subr.bf16.mxu0 0
        %1930 = vmatpush1.bf16.msra.mxu0 0
        %1931 = vmatprep.mubr.bf16.mxu0 0
        %1932 = vmatmul.mubr.bf16.gmra.mrb[0].mxu0 %v1888
        %v1933 = vpop.f32.mrb[0].mxu0
        %v1934 = vadd.f32 0.0, %v1933
        %v1935 = vpop.f32.mrb[0].mxu0
        %v1936 = vadd.f32 0.0, %v1935
        %v1937 = vpop.f32.mrb[0].mxu0
        %v1938 = vpop.f32.mrb[0].mxu0
        %1939 = vdwg.mxu0
        %1940 = vmatprep.subr.bf16.mxu0 0
        %1941 = vmatpush1.bf16.msra.mxu0 %v1897
        %1942 = vmatprep.subr.bf16.mxu0 0
        %1943 = vmatpush1.bf16.msra.mxu0 0
        %1944 = vmatprep.subr.bf16.mxu0 0
        %1945 = vmatpush1.bf16.msra.mxu0 0
        %1946 = vmatprep.subr.bf16.mxu0 0
        %1947 = vmatpush1.bf16.msra.mxu0 0
        %1948 = vmatprep.subr.bf16.mxu0 0
        %1949 = vmatpush1.bf16.msra.mxu0 0
        %1950 = vmatprep.subr.bf16.mxu0 0
        %1951 = vmatpush1.bf16.msra.mxu0 0
        %1952 = vmatprep.subr.bf16.mxu0 0
        %1953 = vmatpush1.bf16.msra.mxu0 0
        %1954 = vmatprep.subr.bf16.mxu0 0
        %1955 = vmatpush1.bf16.msra.mxu0 0
        %1956 = vmatprep.subr.bf16.mxu0 0
        %1957 = vmatpush1.bf16.msra.mxu0 0
        %1958 = vmatprep.subr.bf16.mxu0 0
        %1959 = vmatpush1.bf16.msra.mxu0 0
        %1960 = vmatprep.subr.bf16.mxu0 0
        %1961 = vmatpush1.bf16.msra.mxu0 0
        %1962 = vmatprep.subr.bf16.mxu0 0
        %1963 = vmatpush1.bf16.msra.mxu0 0
        %1964 = vmatprep.subr.bf16.mxu0 0
        %1965 = vmatpush1.bf16.msra.mxu0 0
        %1966 = vmatprep.subr.bf16.mxu0 0
        %1967 = vmatpush1.bf16.msra.mxu0 0
        %1968 = vmatprep.subr.bf16.mxu0 0
        %1969 = vmatpush1.bf16.msra.mxu0 0
        %1970 = vmatprep.subr.bf16.mxu0 0
        %1971 = vmatpush1.bf16.msra.mxu0 0
        %1972 = vmatprep.mubr.bf16.mxu0 0
        %1973 = vmatmul.mubr.bf16.gmra.mrb[0].mxu0 %v1888
        %v1974 = vpop.f32.mrb[0].mxu0
        %v1975 = vadd.f32 0.0, %v1974
        %v1976 = vpop.f32.mrb[0].mxu0
        %v1977 = vpop.f32.mrb[0].mxu0
        %v1978 = vpop.f32.mrb[0].mxu0
        %1979 = vdwg.mxu0
        %v1980 = vld [vmem:[%s1303] sm:$0xff]
        %v1981 = vld [vmem:[%s1303 + $0x8] sm:$0xff]
        %v1982 = vld [vmem:[%s1303 + $0x10] sm:$0xff]
        %v1983 = vadd.f32 %v1980, %v1934
        %v1984 = vadd.f32 %v1981, %v1936
        %v1985 = vadd.f32 %v1982, %v1975
        %1986 = vst [vmem:[%s1303] sm:$0xff] %v1983
        %1987 = vst [vmem:[%s1303 + $0x8] sm:$0xff] %v1984
        %1988 = vst.msk [vmem:[%s1303 + $0x10] sm:$0xff] %vm353, %v1985
        %v1989 = vld [vmem:[%s3] sm:$0x7]
        %v1990 = vld [vmem:[#allocation2] sm:$0xff]
        %v1991 = vld [vmem:[#allocation2 + $0x8] sm:$0xff]
        %v1992 = vld [vmem:[#allocation2 + $0x10] sm:$0xff]
        %v1994 = vlaneseq
        %v1995 = vshrl.u32 %v1994, 7
        %v1996 = vsub.s32 0, %v1995
        %v1997 = vrot.slane %v1989, %v1996
        %v1998 = vlaneseq
        %v1999 = vshrl.u32 %v1998, 7
        %v2000 = vsub.s32 1, %v1999
        %v2001 = vrot.slane %v1989, %v2000
        %v2002 = vlaneseq
        %v2003 = vshrl.u32 %v2002, 7
        %v2004 = vsub.s32 2, %v2003
        %v2005 = vrot.slane %v1989, %v2004
        %v2009 = vmul.f32 %v1990, %v1997
        %v2010 = vmul.f32 %v1991, %v2001
        %v2011 = vmul.f32 %v1992, %v2005
        %v2012 = vadd.f32 %v2009, %v2010
        %v2013 = vsel %vm353, %v2011, 0.0
        %v2014 = vadd.f32 %v2012, %v2013
        %2015 = vadd.xlane.f32.xlu0 %v2014
        %v2016 = vpop.xlane.xlu0 %2015
        %v2017 = vmul.f32 %v2009, %v1990
        %v2018 = vmul.f32 %v2010, %v1991
        %v2019 = vmul.f32 %v2011, %v1992
        %v2020 = vadd.f32 %v2017, %v2018
        %v2021 = vsel %vm353, %v2019, 0.0
        %v2022 = vadd.f32 %v2020, %v2021
        %2023 = vadd.xlane.f32.xlu0 %v2022
        %v2024 = vpop.xlane.xlu0 %2023
        %v2025 = vld [vmem:[%s564] sm:$0xff]
        %v2026 = vld [vmem:[%s564 + $0x8] sm:$0xff]
        %v2027 = vld [vmem:[%s564 + $0x10] sm:$0xff]
        %v2028 = vmul.f32 %v2025, %v1997
        %v2029 = vmul.f32 %v2026, %v2001
        %v2030 = vmul.f32 %v2027, %v2005
        %v2031 = vadd.f32 %v2028, %v2029
        %v2032 = vsel %vm353, %v2030, 0.0
        %v2033 = vadd.f32 %v2031, %v2032
        %2034 = vadd.xlane.f32.xlu0 %v2033
        %v2035 = vpop.xlane.xlu0 %2034
        %v2036 = vmul.f32 %v2028, %v2025
        %v2037 = vmul.f32 %v2029, %v2026
        %v2038 = vmul.f32 %v2030, %v2027
        %v2039 = vadd.f32 %v2036, %v2037
        %v2040 = vsel %vm353, %v2038, 0.0
        %v2041 = vadd.f32 %v2039, %v2040
        %2042 = vadd.xlane.f32.xlu0 %v2041
        %v2043 = vpop.xlane.xlu0 %2042
        %v2044 = vadd.f32 %v2016, %v2035
        %v2045 = vadd.f32 %v2024, %v2043
        %v2046 = vld [vmem:[%s900] sm:$0xff]
        %v2047 = vld [vmem:[%s900 + $0x8] sm:$0xff]
        %v2048 = vld [vmem:[%s900 + $0x10] sm:$0xff]
        %v2049 = vmul.f32 %v2046, %v1997
        %v2050 = vmul.f32 %v2047, %v2001
        %v2051 = vmul.f32 %v2048, %v2005
        %v2052 = vadd.f32 %v2049, %v2050
        %v2053 = vsel %vm353, %v2051, 0.0
        %v2054 = vadd.f32 %v2052, %v2053
        %2055 = vadd.xlane.f32.xlu0 %v2054
        %v2056 = vpop.xlane.xlu0 %2055
        %v2057 = vmul.f32 %v2049, %v2046
        %v2058 = vmul.f32 %v2050, %v2047
        %v2059 = vmul.f32 %v2051, %v2048
        %v2060 = vadd.f32 %v2057, %v2058
        %v2061 = vsel %vm353, %v2059, 0.0
        %v2062 = vadd.f32 %v2060, %v2061
        %2063 = vadd.xlane.f32.xlu0 %v2062
        %v2064 = vpop.xlane.xlu0 %2063
        %v2065 = vadd.f32 %v2044, %v2056
        %v2066 = vadd.f32 %v2045, %v2064
        %v2067 = vld [vmem:[%s1303] sm:$0xff]
        %v2068 = vld [vmem:[%s1303 + $0x8] sm:$0xff]
        %v2069 = vld [vmem:[%s1303 + $0x10] sm:$0xff]
        %v2070 = vmul.f32 %v2067, %v1997
        %v2071 = vmul.f32 %v2068, %v2001
        %v2072 = vmul.f32 %v2069, %v2005
        %v2073 = vadd.f32 %v2070, %v2071
        %v2074 = vsel %vm353, %v2072, 0.0
        %v2075 = vadd.f32 %v2073, %v2074
        %2076 = vadd.xlane.f32.xlu0 %v2075
        %v2077 = vpop.xlane.xlu0 %2076
        %v2078 = vmul.f32 %v2070, %v2067
        %v2079 = vmul.f32 %v2071, %v2068
        %v2080 = vmul.f32 %v2072, %v2069
        %v2081 = vadd.f32 %v2078, %v2079
        %v2082 = vsel %vm353, %v2080, 0.0
        %v2083 = vadd.f32 %v2081, %v2082
        %2084 = vadd.xlane.f32.xlu0 %v2083
        %v2085 = vpop.xlane.xlu0 %2084
        %v2086 = vadd.f32 %v2065, %v2077
        %v2087 = vadd.f32 %v2066, %v2085
        %v2088 = vmul.f32 %v2086, 0.0009765625
        %v2089 = vmul.f32 %v2087, 0.0009765625
        %v2090 = vmul.f32 %v2088, %v2088
        %v2091 = vsub.f32 %v2089, %v2090
        %v2092 = vadd.f32 %v2091, 1e-05
        %v2093 = vrsqrt.pop %v2092
        %v2094 = vld [vmem:[%s243] sm:$0xff]
        %v2095 = vmul.f32 %v2093, %v2094
        %v2096 = vmul.f32 %v2088, %v2095
        %2098 = vrot.lane.b32.xlu0 %v2096, 1
        %v2099 = vpop.permute.xlu0 %2098
        %v2101 = vsub.f32 %v2094, %v2099
        %2103 = vset.pattern.permute.xlu0 1
        %2104 = vperm.xlu0 %2103, %v2095
        %v2105 = vpop.permute.xlu0 %2104
        %v2107 = vmul.f32 %v1990, %v2105
        %v2108 = vmul.f32 %v1991, %v2105
        %v2109 = vmul.f32 %v1992, %v2105
        %2111 = vset.pattern.permute.xlu0 2
        %2112 = vperm.xlu0 %2111, %v2101
        %v2113 = vpop.permute.xlu0 %2112
        %v2115 = vadd.f32 %v2107, %v2113
        %v2116 = vadd.f32 %v2108, %v2113
        %v2117 = vadd.f32 %v2109, %v2113
        %v2118 = vpack.c.bf16 %v2115, %v2115
        %v2119 = vpack.c.bf16 %v2116, %v2116
        %v2120 = vpack.c.bf16 %v2117, %v2117
        %v2124 = vunpack.c.l.b16 %v2118
        %v2125 = vunpack.c.l.b16 %v2119
        %v2126 = vunpack.c.l.b16 %v2120
        %v2127 = vpack.c.b16 %v2125, %v2124
        %v2128 = vpack.c.b16 %v2126, %v2126
        %2131 = vst [vmem:[%s230] sm:$0xff] %v2127
        %vm2132 = vcmask 257024
        %2133 = vst.msk [vmem:[%s230 + $0x8] sm:$0xf] %vm2132, %v2128
        %v2134 = vld [vmem:[%s564] sm:$0xff]
        %v2135 = vld [vmem:[%s564 + $0x8] sm:$0xff]
        %v2136 = vld [vmem:[%s564 + $0x10] sm:$0xff]
        %v2137 = vmul.f32 %v2134, %v2105
        %v2138 = vmul.f32 %v2135, %v2105
        %v2139 = vmul.f32 %v2136, %v2105
        %v2140 = vadd.f32 %v2137, %v2113
        %v2141 = vadd.f32 %v2138, %v2113
        %v2142 = vadd.f32 %v2139, %v2113
        %v2143 = vpack.c.bf16 %v2140, %v2140
        %v2144 = vpack.c.bf16 %v2141, %v2141
        %v2145 = vpack.c.bf16 %v2142, %v2142
        %v2149 = vunpack.c.l.b16 %v2143
        %v2150 = vunpack.c.l.b16 %v2144
        %v2151 = vunpack.c.l.b16 %v2145
        %v2152 = vpack.c.b16 %v2150, %v2149
        %v2153 = vpack.c.b16 %v2151, %v2151
        %s2156 = scalar_lea.vmem %s230, 12 [#allocation3]
        %2157 = vst [vmem:[%s2156] sm:$0xff] %v2152
        %2158 = vst.msk [vmem:[%s2156 + $0x8] sm:$0xf] %vm2132, %v2153
        %v2159 = vld [vmem:[%s900] sm:$0xff]
        %v2160 = vld [vmem:[%s900 + $0x8] sm:$0xff]
        %v2161 = vld [vmem:[%s900 + $0x10] sm:$0xff]
        %v2162 = vmul.f32 %v2159, %v2105
        %v2163 = vmul.f32 %v2160, %v2105
        %v2164 = vmul.f32 %v2161, %v2105
        %v2165 = vadd.f32 %v2162, %v2113
        %v2166 = vadd.f32 %v2163, %v2113
        %v2167 = vadd.f32 %v2164, %v2113
        %v2168 = vpack.c.bf16 %v2165, %v2165
        %v2169 = vpack.c.bf16 %v2166, %v2166
        %v2170 = vpack.c.bf16 %v2167, %v2167
        %v2174 = vunpack.c.l.b16 %v2168
        %v2175 = vunpack.c.l.b16 %v2169
        %v2176 = vunpack.c.l.b16 %v2170
        %v2177 = vpack.c.b16 %v2175, %v2174
        %v2178 = vpack.c.b16 %v2176, %v2176
        %s2181 = scalar_lea.vmem %s230, 24 [#allocation3]
        %2182 = vst [vmem:[%s2181] sm:$0xff] %v2177
        %2183 = vst.msk [vmem:[%s2181 + $0x8] sm:$0xf] %vm2132, %v2178
        %v2184 = vld [vmem:[%s1303] sm:$0xff]
        %v2185 = vld [vmem:[%s1303 + $0x8] sm:$0xff]
        %v2186 = vld [vmem:[%s1303 + $0x10] sm:$0xff]
        %v2187 = vmul.f32 %v2184, %v2105
        %v2188 = vmul.f32 %v2185, %v2105
        %v2189 = vmul.f32 %v2186, %v2105
        %v2190 = vadd.f32 %v2187, %v2113
        %v2191 = vadd.f32 %v2188, %v2113
        %v2192 = vadd.f32 %v2189, %v2113
        %v2193 = vpack.c.bf16 %v2190, %v2190
        %v2194 = vpack.c.bf16 %v2191, %v2191
        %v2195 = vpack.c.bf16 %v2192, %v2192
        %v2199 = vunpack.c.l.b16 %v2193
        %v2200 = vunpack.c.l.b16 %v2194
        %v2201 = vunpack.c.l.b16 %v2195
        %v2202 = vpack.c.b16 %v2200, %v2199
        %v2203 = vpack.c.b16 %v2201, %v2201
        %s2206 = scalar_lea.vmem %s230, 36 [#allocation3]
        %2207 = vst [vmem:[%s2206] sm:$0xff] %v2202
        %2208 = vst.msk [vmem:[%s2206 + $0x8] sm:$0xf] %vm2132, %v2203
        %s2209 = sand.u32 %s139, 1
        %s2210 = scalar_lea.sflag [#allocation4], %s2209
        %s2211 = sand.u32 %s139, 1
        %s2212 = smul.addr %s2211, 48
        %s2213 = scalar_lea.vmem [#allocation3], %s2212
        // Predicated region
        $region37: #{tpu_custom_call.1} parent=35 // pred_check
          %p2214 = pneg %p149
        $region38: #{tpu_custom_call.1} parent=35 // pred_check_branch
          %2216 = sbr.rel (%p2214) target = $region40
        $region39: #{tpu_custom_call.1} parent=35 // pred_region
          %s2218 = ssub.s32 768, 768
          %2219 = vsyncadd %s2210, %s2218
          %s2220 = smul.addr %s23, 3
          %s2221 = smul.addr %s22, 12
          %s2222 = sadd.s32 %s2220, %s2221
          %s2223 = smul.addr %s2222, 64
          %s2224 = scalar_lea.hbm %s4, %s2223
          %s2225 = sshll.u32 %s2213, 4
          %s2226 = int_to_ptr.vmem [resolvable:$true] %s2225
          %2231 = dma.vmem_to_hbm [thread:$0]  %s2226, 768, %s2224, %s2210, 192, 192, 12
        $region40: #{tpu_custom_call.1} parent=35 // pred_fallthru
          _
      $region36: #{tpu_custom_call.1} parent=5 // pred_fallthru
        _
      %p2232 = scmp.le.s32.totalorder 2, %s13
      // Predicated region
      $region41: #{tpu_custom_call.1} parent=5 // pred_check
        %p2233 = pneg %p2232
      $region42: #{tpu_custom_call.1} parent=5 // pred_check_branch
        %2235 = sbr.rel (%p2233) target = $region44
      $region43: #{tpu_custom_call.1} parent=5 // pred_region
        %s2236 = ssub.s32 %s13, 2
        // Predicated region
        $region45: #{tpu_custom_call.1} parent=43 // pred_check
          %p2237 = pneg %p155
        $region46: #{tpu_custom_call.1} parent=43 // pred_check_branch
          %2239 = sbr.rel (%p2237) target = $region48
        $region47: #{tpu_custom_call.1} parent=43 // pred_region
          %s2240 = sand.u32 %s140, 1
          %s2241 = scalar_lea.sflag [#allocation4], %s2240
          %s2242 = sand.u32 %s140, 1
          %s2243 = smul.addr %s2242, 48
          %s2244 = scalar_lea.vmem [#allocation3], %s2243
          %2245 = dma.done %s2241, 768
        $region48: #{tpu_custom_call.1} parent=43 // pred_fallthru
          _
      $region44: #{tpu_custom_call.1} parent=5 // pred_fallthru
        _
    $region6: #{tpu_custom_call.1} parent=1 // loop_footer
      %s17 = sadd.s32 1, %s13
    $region7: #{tpu_custom_call.1} parent=1 // loop_footer_branch
      %12 = sbr.rel target = $region3
    $region8: #{tpu_custom_call.1} parent=1 // loop_exit
      _
    %2246 = vsyncpa [#allocation4], 1
    %s2247 = scalar_lea.sflag [#allocation4], 1
    %2248 = vsyncpa %s2247, 1

</llo_original>
